<compile_context>
chip_gen: v6e
topology: v6e:2x2x1
jax: 0.10.0
libtpu: 0.0.40
codegen_flags: <defaults>
</compile_context>

<pallas_src>
import jax
import jax.numpy as jnp
from jax.experimental import pallas as pl
from jax.experimental.pallas import tpu as pltpu


# Pixel rows (of 128 lanes) per tile: 128 rows = 16384 pixels per grid step.
MAX_TILE_ROWS = 128


# ------------------------------ kernels -------------------------------------


def _guidemap_kernel(x_ref, wg_ref, bg_ref, out_ref):
    """1x1 conv (x_channel -> 1) on one (Cx, R, 128) pixel-plane tile."""
    cx = x_ref.shape[0]
    acc = wg_ref[0] * x_ref[0].astype(jnp.float32) + bg_ref[0]
    for i in range(1, cx):
        acc = acc + wg_ref[i] * x_ref[i].astype(jnp.float32)
    out_ref[0] = acc.astype(out_ref.dtype)


def _gated_spatial_conv_kernel(y_ref, g_ref, w1x_ref, w1g_ref, b1_ref,
                               w2_ref, b2_ref, wf_ref, bf_ref, out_ref):
    """GatedSpatailConv2d hot path on one (C, R, 128) pixel-plane tile.

    Weights/biases are scalars in SMEM; every term is a scalar x dense-plane
    FMA on the VPU, so no sublane broadcasts and no masked stores.
    """
    c = y_ref.shape[0]
    c1 = c + 1

    g = g_ref[0].astype(jnp.float32)                        # (R, 128)
    xs = [y_ref[i].astype(jnp.float32) for i in range(c)]   # C dense planes

    # Conv1x1(C+1 -> C+1) with BN1 folded in; the gating channel of the
    # never-materialized concat is the scalar-weighted guide plane.
    hs = []
    for j in range(c1):
        acc = w1g_ref[j] * g + b1_ref[j]
        for i in range(c):
            acc = acc + w1x_ref[j, i] * xs[i]
        hs.append(jnp.maximum(acc, 0.0))                    # ReLU

    # Conv1x1(C+1 -> 1) with BN2 folded in, then sigmoid gate (EUP).
    a = w2_ref[0] * hs[0] + b2_ref[0]
    for j in range(1, c1):
        a = a + w2_ref[j] * hs[j]
    gate = jax.nn.sigmoid(a) + 1.0

    # Gated scaling + final Conv1x1(C -> C).
    gx = [xs[i] * gate for i in range(c)]
    for o in range(c):
        acc = wf_ref[o, 0] * gx[0] + bf_ref[o]
        for i in range(1, c):
            acc = acc + wf_ref[o, i] * gx[i]
        out_ref[o] = acc.astype(out_ref.dtype)


# ------------------------------ spec helpers ---------------------------------


def _plane_spec(channels, r_tile):
    """(Squeezed batch, C, R_tile, 128) lane-dense pixel-plane block."""
    return pl.BlockSpec((pl.Squeezed(), channels, r_tile, 128),
                        lambda n, i: (n, 0, i, 0))


def _smem_spec():
    """Whole (tiny) weight array resident in SMEM, read as scalars."""
    return pl.BlockSpec(memory_space=pltpu.MemorySpace.SMEM)


def _to_planes(arr):
    """(N, C, P) -> (N, C, R, 128); pads P only to the next multiple of 128."""
    n, c, p = arr.shape
    p_pad = -(-p // 128) * 128
    if p_pad != p:
        arr = jnp.pad(arr, ((0, 0), (0, 0), (0, p_pad - p)))
    return arr.reshape(n, c, p_pad // 128, 128)


def _from_planes(arr, p):
    """(N, C, R, 128) -> (N, C, P), dropping 128-alignment padding if any."""
    n, c = arr.shape[:2]
    flat = arr.reshape(n, c, -1)
    if flat.shape[-1] != p:
        flat = flat[:, :, :p]
    return flat


def _pick_row_tile(r_total, n_batch):
    """Pick a row-tile size; keep >= 2 grid steps so v7x megacore shards."""
    r_tile = min(r_total, MAX_TILE_ROWS)
    n_steps = n_batch * (-(-r_total // r_tile))
    if n_steps < 2 and r_total >= 16:
        half = -(-r_total // 2)
        r_tile = -(-half // 8) * 8          # sublane-aligned (multiple of 8)
    return r_tile


# ------------------------------ wrappers -------------------------------------


def guidemap_conv(x, wg, bg):
    """Guide_flow.guidemap: 1x1 conv (x_channel -> 1) over NCHW, f32 out."""
    n, cx, h, w = x.shape
    p = h * w
    xp = _to_planes(x.reshape(n, cx, p))
    r_total = xp.shape[2]
    r_tile = _pick_row_tile(r_total, n)
    out = pl.pallas_call(
        _guidemap_kernel,
        out_shape=jax.ShapeDtypeStruct((n, 1, r_total, 128), jnp.float32),
        grid=(n, pl.cdiv(r_total, r_tile)),
        in_specs=[
            _plane_spec(cx, r_tile),          # x pixel planes
            _smem_spec(),                     # conv weight (SMEM scalars)
            _smem_spec(),                     # conv bias
        ],
        out_specs=_plane_spec(1, r_tile),
        compiler_params=pltpu.CompilerParams(
            dimension_semantics=("parallel", "parallel")),
    )(xp, wg.reshape(cx).astype(jnp.float32),
      bg.reshape(1).astype(jnp.float32))
    return _from_planes(out, p).reshape(n, 1, h, w)


def fold_bn(gamma, beta, mean, var, eps=1e-5):
    scale = gamma / jnp.sqrt(var + eps)
    shift = beta - mean * scale
    return scale, shift


def gated_spatial_conv(input_features, gating_features, params):
    """GatedSpatailConv2d forward. input: (N,C,H,W); gating: (N,1,H,W)."""
    n, c, h, w = input_features.shape
    c1 = c + 1
    p = h * w

    # Fold eval-mode BatchNorms into the adjacent 1x1 convs (param prep, off
    # the hot path; no per-tile scale/shift and no tiny VMEM blocks).
    # TODO(synk): training-mode BN (batch statistics) would need a global
    # N*H*W reduction; eval-mode running-stat semantics are used here.
    s1, sh1 = fold_bn(params["bn1_gamma"], params["bn1_beta"],
                      params["bn1_mean"], params["bn1_var"])
    s2, sh2 = fold_bn(params["bn2_gamma"], params["bn2_beta"],
                      params["bn2_mean"], params["bn2_var"])
    w1f = params["w1"] * s1[None, :]                               # (c1, c1)
    b1f = params["b1"] + jnp.sum(params["w1"] * sh1[None, :], axis=1)  # (c1,)
    w2f = (params["w2"] * s2[:, None]).reshape(c1)                 # (c1,)
    b2f = (params["b2"] * s2 + sh2).reshape(1)                     # (1,)

    w1x = w1f[:, :c]                                  # (c1, c) input columns
    w1g = w1f[:, c]                                   # (c1,)   gating column

    yp = _to_planes(input_features.reshape(n, c, p))
    gp = _to_planes(gating_features.reshape(n, 1, p))
    r_total = yp.shape[2]
    r_tile = _pick_row_tile(r_total, n)

    out = pl.pallas_call(
        _gated_spatial_conv_kernel,
        out_shape=jax.ShapeDtypeStruct((n, c, r_total, 128),
                                       input_features.dtype),
        grid=(n, pl.cdiv(r_total, r_tile)),
        in_specs=[
            _plane_spec(c, r_tile),                   # y pixel planes
            _plane_spec(1, r_tile),                   # guide-flow plane
            _smem_spec(),                             # w1 (input columns)
            _smem_spec(),                             # w1 (gating column)
            _smem_spec(),                             # b1 (BN folded)
            _smem_spec(),                             # w2 (BN folded)
            _smem_spec(),                             # b2 (BN folded)
            _smem_spec(),                             # final conv weight
            _smem_spec(),                             # final conv bias
        ],
        out_specs=_plane_spec(c, r_tile),
        compiler_params=pltpu.CompilerParams(
            dimension_semantics=("parallel", "parallel")),
    )(yp, gp, w1x, w1g, b1f, w2f, b2f, params["wf"], params["bf"])
    return _from_planes(out, p).reshape(n, c, h, w)


# ------------------------------ bilinear resize -------------------------------


def _interp_matrix(out_size, in_size):
    """Bilinear (align_corners=False) interpolation weights, (out, in)."""
    if out_size == in_size:
        return jnp.eye(in_size, dtype=jnp.float32)
    scale = in_size / out_size
    src = jnp.maximum(
        (jnp.arange(out_size, dtype=jnp.float32) + 0.5) * scale - 0.5, 0.0)
    i0 = jnp.floor(src).astype(jnp.int32)
    i1 = jnp.minimum(i0 + 1, in_size - 1)
    w1 = src - i0.astype(jnp.float32)
    return (jax.nn.one_hot(i0, in_size, dtype=jnp.float32) * (1.0 - w1)[:, None]
            + jax.nn.one_hot(i1, in_size, dtype=jnp.float32) * w1[:, None])


def bilinear_resize_matmul(img, out_h, out_w):
    """F.interpolate(mode='bilinear') via two tiny separable matmuls."""
    _, _, in_h, in_w = img.shape
    if (in_h, in_w) == (out_h, out_w):
        return img.astype(jnp.float32)
    hi = jax.lax.Precision.HIGHEST
    ry = _interp_matrix(out_h, in_h)                  # (out_h, in_h)
    cw = _interp_matrix(out_w, in_w)                  # (out_w, in_w)
    t = jnp.einsum("Hh,nchw->ncHw", ry, img.astype(jnp.float32), precision=hi)
    return jnp.einsum("Ww,ncHw->ncHW", cw, t, precision=hi)


def bilinear_resize_nchw(img, out_h, out_w):
    """Gather-based bilinear (align_corners=False) — reference-path only."""
    n, c, in_h, in_w = img.shape
    if (in_h, in_w) == (out_h, out_w):
        return img.astype(jnp.float32)
    sy = in_h / out_h
    sx = in_w / out_w
    src_y = jnp.maximum(
        (jnp.arange(out_h, dtype=jnp.float32) + 0.5) * sy - 0.5, 0.0)
    src_x = jnp.maximum(
        (jnp.arange(out_w, dtype=jnp.float32) + 0.5) * sx - 0.5, 0.0)
    y0 = jnp.floor(src_y).astype(jnp.int32)
    x0 = jnp.floor(src_x).astype(jnp.int32)
    y1 = jnp.minimum(y0 + 1, in_h - 1)
    x1 = jnp.minimum(x0 + 1, in_w - 1)
    wy = (src_y - y0.astype(jnp.float32))[:, None]
    wx = (src_x - x0.astype(jnp.float32))[None, :]

    def gather(yy, xx):
        rows = jnp.take(img, yy, axis=2)
        return jnp.take(rows, xx, axis=3).astype(jnp.float32)

    top = gather(y0, x0) * (1.0 - wx) + gather(y0, x1) * wx
    bot = gather(y1, x0) * (1.0 - wx) + gather(y1, x1) * wx
    return top * (1.0 - wy) + bot * wy


def guide_flow_forward(x, y, params):
    """Guide_flow.forward: guidemap conv -> bilinear upsample -> gated conv."""
    guide = guidemap_conv(x, params["wg"], params["bg"])        # f32, low-res
    guide_flow = bilinear_resize_matmul(guide, y.shape[2], y.shape[3])
    return gated_spatial_conv(y, guide_flow.astype(y.dtype), params)


# ------------------------------ reference & demo -----------------------------


def make_params(key, x_channels, y_channels):
    """Deterministic parameter init (shapes per the PyTorch __init__)."""
    c1 = y_channels + 1
    ks = jax.random.split(key, 12)
    p = {}
    # Guide_flow.guidemap: Conv2d(x_channels, 1, 1)
    p["wg"] = 0.2 * jax.random.normal(ks[0], (1, x_channels), jnp.float32)
    p["bg"] = 0.1 * jax.random.normal(ks[1], (1,), jnp.float32)
    # GatedSpatailConv2d._gate_conv[0]: BatchNorm2d(y_channels + 1)
    p["bn1_gamma"] = 1.0 + 0.1 * jax.random.normal(ks[2], (c1,), jnp.float32)
    p["bn1_beta"] = 0.1 * jax.random.normal(ks[3], (c1,), jnp.float32)
    p["bn1_mean"] = 0.1 * jax.random.normal(ks[4], (c1,), jnp.float32)
    p["bn1_var"] = 1.0 + 0.1 * jax.random.uniform(ks[5], (c1,), jnp.float32)
    # _gate_conv[1]: Conv2d(c1, c1, 1)
    p["w1"] = 0.2 * jax.random.normal(ks[6], (c1, c1), jnp.float32)
    p["b1"] = 0.1 * jax.random.normal(ks[7], (c1,), jnp.float32)
    # _gate_conv[3]: Conv2d(c1, 1, 1)
    p["w2"] = 0.2 * jax.random.normal(ks[8], (1, c1), jnp.float32)
    p["b2"] = 0.1 * jax.random.normal(ks[9], (1,), jnp.float32)
    # _gate_conv[4]: BatchNorm2d(1)
    p["bn2_gamma"] = jnp.ones((1,), jnp.float32) * 1.05
    p["bn2_beta"] = jnp.ones((1,), jnp.float32) * 0.02
    p["bn2_mean"] = jnp.zeros((1,), jnp.float32)
    p["bn2_var"] = jnp.ones((1,), jnp.float32)
    # GatedSpatailConv2d.conv: Conv2d(y_channels, y_channels, 1)
    p["wf"] = 0.2 * jax.random.normal(ks[10], (y_channels, y_channels),
                                      jnp.float32)
    p["bf"] = 0.1 * jax.random.normal(ks[11], (y_channels,), jnp.float32)
    return p


def reference_forward(x, y, params):
    """Pure-JAX reference of the PyTorch forward (eval-mode BN, unfused)."""
    hi = jax.lax.Precision.HIGHEST

    def conv1x1(wt, b, t):
        return (jnp.einsum("oc,nchw->nohw", wt, t, precision=hi)
                + b[None, :, None, None])

    def bn(t, gamma, beta, mean, var, eps=1e-5):
        inv = gamma / jnp.sqrt(var + eps)
        return ((t - mean[None, :, None, None]) * inv[None, :, None, None]
                + beta[None, :, None, None])

    guide = conv1x1(params["wg"], params["bg"], x)
    guide_flow = bilinear_resize_nchw(guide, y.shape[2], y.shape[3])
    cat = jnp.concatenate([y, guide_flow], axis=1)
    t = bn(cat, params["bn1_gamma"], params["bn1_beta"],
           params["bn1_mean"], params["bn1_var"])
    h = jnp.maximum(conv1x1(params["w1"], params["b1"], t), 0.0)
    a = conv1x1(params["w2"], params["b2"], h)
    a = jax.nn.sigmoid(bn(a, params["bn2_gamma"], params["bn2_beta"],
                          params["bn2_mean"], params["bn2_var"]))
    gated = y * (a + 1.0)
    return conv1x1(params["wf"], params["bf"], gated)


if __name__ == "__main__":
    batch = 2
    x_channel, y_channel = 8, 4
    hx, wx = 8, 8            # low-res features that produce the guide map
    hy, wy = 16, 16          # high-res features to be gated

    key = jax.random.PRNGKey(0)
    kx, ky, kp = jax.random.split(key, 3)
    x = jax.random.normal(kx, (batch, x_channel, hx, wx), jnp.float32)
    y = jax.random.normal(ky, (batch, y_channel, hy, wy), jnp.float32)
    params = make_params(kp, x_channel, y_channel)

    fwd = jax.jit(guide_flow_forward)

    out = jax.block_until_ready(fwd(x, y, params))
    ref = jax.block_until_ready(reference_forward(x, y, params))
    assert out.shape == (batch, y_channel, hy, wy)
    assert jnp.allclose(out, ref, atol=1e-4, rtol=1e-4), "f32 mismatch vs ref"

    # bf16 streaming path: halves HBM read/write traffic for the dominant
    # (y-plane) operands; all in-kernel math stays f32, so only input/output
    # rounding differs from the reference.
    out_bf16 = jax.block_until_ready(
        fwd(x.astype(jnp.bfloat16), y.astype(jnp.bfloat16), params))
    assert out_bf16.dtype == jnp.bfloat16
    assert jnp.allclose(out_bf16.astype(jnp.float32), ref,
                        atol=5e-2, rtol=5e-2), "bf16 mismatch vs ref"

    print("KERNEL_OK")
</pallas_src>

<mosaic_0001>
module attributes {stable_mosaic.version = 11 : i64} {
  func.func @_guidemap_kernel(%arg0: i32, %arg1: i32, %arg2: memref<1x8x1x128xf32, #tpu.memory_space<vmem>>, %arg3: memref<8xf32, #tpu.memory_space<smem>>, %arg4: memref<1xf32, #tpu.memory_space<smem>>, %arg5: memref<1x1x1x128xf32, #tpu.memory_space<vmem>>) attributes {dimension_semantics = [#tpu.dimension_semantics<parallel>, #tpu.dimension_semantics<parallel>], iteration_bounds = array<i64: 2, 1>, scalar_prefetch = 0 : i64, scratch_operands = 0 : i64, tpu.core_type = #tpu.core_type<tc>, window_params = [{transform_indices = @transform_0, window_bounds = array<i64: 1, 8, 1, 128>}, {transform_indices = @transform_1, window_bounds = array<i64: 8>}, {transform_indices = @transform_2, window_bounds = array<i64: 1>}, {transform_indices = @transform_3, window_bounds = array<i64: 1, 1, 1, 128>}]} {
    %c0 = arith.constant 0 : index
    %0 = memref.load %arg3[%c0] : memref<8xf32, #tpu.memory_space<smem>>
    %c0_0 = arith.constant 0 : index
    %c0_1 = arith.constant 0 : index
    %c0_2 = arith.constant 0 : index
    %c0_3 = arith.constant 0 : index
    %1 = vector.load %arg2[%c0_0, %c0_1, %c0_2, %c0_3] : memref<1x8x1x128xf32, #tpu.memory_space<vmem>>, vector<1x1x1x128xf32>
    %2 = vector.shape_cast %1 : vector<1x1x1x128xf32> to vector<1x128xf32>
    %3 = vector.broadcast %0 : f32 to vector<1x128xf32>
    %4 = arith.mulf %3, %2 : vector<1x128xf32>
    %c0_4 = arith.constant 0 : index
    %5 = memref.load %arg4[%c0_4] : memref<1xf32, #tpu.memory_space<smem>>
    %6 = vector.broadcast %5 : f32 to vector<1x128xf32>
    %7 = arith.addf %4, %6 : vector<1x128xf32>
    %c1 = arith.constant 1 : index
    %8 = memref.load %arg3[%c1] : memref<8xf32, #tpu.memory_space<smem>>
    %c0_5 = arith.constant 0 : index
    %c1_6 = arith.constant 1 : index
    %c0_7 = arith.constant 0 : index
    %c0_8 = arith.constant 0 : index
    %9 = vector.load %arg2[%c0_5, %c1_6, %c0_7, %c0_8] : memref<1x8x1x128xf32, #tpu.memory_space<vmem>>, vector<1x1x1x128xf32>
    %10 = vector.shape_cast %9 : vector<1x1x1x128xf32> to vector<1x128xf32>
    %11 = vector.broadcast %8 : f32 to vector<1x128xf32>
    %12 = arith.mulf %11, %10 : vector<1x128xf32>
    %13 = arith.addf %7, %12 : vector<1x128xf32>
    %c2 = arith.constant 2 : index
    %14 = memref.load %arg3[%c2] : memref<8xf32, #tpu.memory_space<smem>>
    %c0_9 = arith.constant 0 : index
    %c2_10 = arith.constant 2 : index
    %c0_11 = arith.constant 0 : index
    %c0_12 = arith.constant 0 : index
    %15 = vector.load %arg2[%c0_9, %c2_10, %c0_11, %c0_12] : memref<1x8x1x128xf32, #tpu.memory_space<vmem>>, vector<1x1x1x128xf32>
    %16 = vector.shape_cast %15 : vector<1x1x1x128xf32> to vector<1x128xf32>
    %17 = vector.broadcast %14 : f32 to vector<1x128xf32>
    %18 = arith.mulf %17, %16 : vector<1x128xf32>
    %19 = arith.addf %13, %18 : vector<1x128xf32>
    %c3 = arith.constant 3 : index
    %20 = memref.load %arg3[%c3] : memref<8xf32, #tpu.memory_space<smem>>
    %c0_13 = arith.constant 0 : index
    %c3_14 = arith.constant 3 : index
    %c0_15 = arith.constant 0 : index
    %c0_16 = arith.constant 0 : index
    %21 = vector.load %arg2[%c0_13, %c3_14, %c0_15, %c0_16] : memref<1x8x1x128xf32, #tpu.memory_space<vmem>>, vector<1x1x1x128xf32>
    %22 = vector.shape_cast %21 : vector<1x1x1x128xf32> to vector<1x128xf32>
    %23 = vector.broadcast %20 : f32 to vector<1x128xf32>
    %24 = arith.mulf %23, %22 : vector<1x128xf32>
    %25 = arith.addf %19, %24 : vector<1x128xf32>
    %c4 = arith.constant 4 : index
    %26 = memref.load %arg3[%c4] : memref<8xf32, #tpu.memory_space<smem>>
    %c0_17 = arith.constant 0 : index
    %c4_18 = arith.constant 4 : index
    %c0_19 = arith.constant 0 : index
    %c0_20 = arith.constant 0 : index
    %27 = vector.load %arg2[%c0_17, %c4_18, %c0_19, %c0_20] : memref<1x8x1x128xf32, #tpu.memory_space<vmem>>, vector<1x1x1x128xf32>
    %28 = vector.shape_cast %27 : vector<1x1x1x128xf32> to vector<1x128xf32>
    %29 = vector.broadcast %26 : f32 to vector<1x128xf32>
    %30 = arith.mulf %29, %28 : vector<1x128xf32>
    %31 = arith.addf %25, %30 : vector<1x128xf32>
    %c5 = arith.constant 5 : index
    %32 = memref.load %arg3[%c5] : memref<8xf32, #tpu.memory_space<smem>>
    %c0_21 = arith.constant 0 : index
    %c5_22 = arith.constant 5 : index
    %c0_23 = arith.constant 0 : index
    %c0_24 = arith.constant 0 : index
    %33 = vector.load %arg2[%c0_21, %c5_22, %c0_23, %c0_24] : memref<1x8x1x128xf32, #tpu.memory_space<vmem>>, vector<1x1x1x128xf32>
    %34 = vector.shape_cast %33 : vector<1x1x1x128xf32> to vector<1x128xf32>
    %35 = vector.broadcast %32 : f32 to vector<1x128xf32>
    %36 = arith.mulf %35, %34 : vector<1x128xf32>
    %37 = arith.addf %31, %36 : vector<1x128xf32>
    %c6 = arith.constant 6 : index
    %38 = memref.load %arg3[%c6] : memref<8xf32, #tpu.memory_space<smem>>
    %c0_25 = arith.constant 0 : index
    %c6_26 = arith.constant 6 : index
    %c0_27 = arith.constant 0 : index
    %c0_28 = arith.constant 0 : index
    %39 = vector.load %arg2[%c0_25, %c6_26, %c0_27, %c0_28] : memref<1x8x1x128xf32, #tpu.memory_space<vmem>>, vector<1x1x1x128xf32>
    %40 = vector.shape_cast %39 : vector<1x1x1x128xf32> to vector<1x128xf32>
    %41 = vector.broadcast %38 : f32 to vector<1x128xf32>
    %42 = arith.mulf %41, %40 : vector<1x128xf32>
    %43 = arith.addf %37, %42 : vector<1x128xf32>
    %c7 = arith.constant 7 : index
    %44 = memref.load %arg3[%c7] : memref<8xf32, #tpu.memory_space<smem>>
    %c0_29 = arith.constant 0 : index
    %c7_30 = arith.constant 7 : index
    %c0_31 = arith.constant 0 : index
    %c0_32 = arith.constant 0 : index
    %45 = vector.load %arg2[%c0_29, %c7_30, %c0_31, %c0_32] : memref<1x8x1x128xf32, #tpu.memory_space<vmem>>, vector<1x1x1x128xf32>
    %46 = vector.shape_cast %45 : vector<1x1x1x128xf32> to vector<1x128xf32>
    %47 = vector.broadcast %44 : f32 to vector<1x128xf32>
    %48 = arith.mulf %47, %46 : vector<1x128xf32>
    %49 = arith.addf %43, %48 : vector<1x128xf32>
    %c0_33 = arith.constant 0 : index
    %c0_34 = arith.constant 0 : index
    %c0_35 = arith.constant 0 : index
    %c0_36 = arith.constant 0 : index
    %50 = vector.load %arg5[%c0_33, %c0_34, %c0_35, %c0_36] : memref<1x1x1x128xf32, #tpu.memory_space<vmem>>, vector<1x1x1x128xf32>
    %51 = vector.shape_cast %50 : vector<1x1x1x128xf32> to vector<1x128xf32>
    %52 = vector.shape_cast %49 : vector<1x128xf32> to vector<1x1x1x128xf32>
    tpu.vector_store %arg5[%c0_33, %c0_34, %c0_35, %c0_36], %52 {strides = array<i32>} : memref<1x1x1x128xf32, #tpu.memory_space<vmem>>, vector<1x1x1x128xf32>,
    return
  }
  func.func @transform_0(%arg0: i32, %arg1: i32) -> (i32, i32, i32, i32) {
    %c0_i32 = arith.constant 0 : i32
    %c0_i32_0 = arith.constant 0 : i32
    %c0_i32_1 = arith.constant 0 : i32
    return %arg0, %c0_i32, %arg1, %c0_i32_0 : i32, i32, i32, i32
  }
  func.func @transform_1(%arg0: i32, %arg1: i32) -> i32 {
    %c0_i32 = arith.constant 0 : i32
    %c0_i32_0 = arith.constant 0 : i32
    return %c0_i32 : i32
  }
  func.func @transform_2(%arg0: i32, %arg1: i32) -> i32 {
    %c0_i32 = arith.constant 0 : i32
    %c0_i32_0 = arith.constant 0 : i32
    return %c0_i32 : i32
  }
  func.func @transform_3(%arg0: i32, %arg1: i32) -> (i32, i32, i32, i32) {
    %c0_i32 = arith.constant 0 : i32
    %c0_i32_0 = arith.constant 0 : i32
    %c0_i32_1 = arith.constant 0 : i32
    return %arg0, %c0_i32, %arg1, %c0_i32_0 : i32, i32, i32, i32
  }
}

module attributes {stable_mosaic.version = 11 : i64} {
  func.func @_gated_spatial_conv_kernel(%arg0: i32, %arg1: i32, %arg2: memref<1x4x2x128xf32, #tpu.memory_space<vmem>>, %arg3: memref<1x1x2x128xf32, #tpu.memory_space<vmem>>, %arg4: memref<5x4xf32, #tpu.memory_space<smem>>, %arg5: memref<5xf32, #tpu.memory_space<smem>>, %arg6: memref<5xf32, #tpu.memory_space<smem>>, %arg7: memref<5xf32, #tpu.memory_space<smem>>, %arg8: memref<1xf32, #tpu.memory_space<smem>>, %arg9: memref<4x4xf32, #tpu.memory_space<smem>>, %arg10: memref<4xf32, #tpu.memory_space<smem>>, %arg11: memref<1x4x2x128xf32, #tpu.memory_space<vmem>>) attributes {dimension_semantics = [#tpu.dimension_semantics<parallel>, #tpu.dimension_semantics<parallel>], iteration_bounds = array<i64: 2, 1>, scalar_prefetch = 0 : i64, scratch_operands = 0 : i64, tpu.core_type = #tpu.core_type<tc>, window_params = [{transform_indices = @transform_0, window_bounds = array<i64: 1, 4, 2, 128>}, {transform_indices = @transform_1, window_bounds = array<i64: 1, 1, 2, 128>}, {transform_indices = @transform_2, window_bounds = array<i64: 5, 4>}, {transform_indices = @transform_3, window_bounds = array<i64: 5>}, {transform_indices = @transform_4, window_bounds = array<i64: 5>}, {transform_indices = @transform_5, window_bounds = array<i64: 5>}, {transform_indices = @transform_6, window_bounds = array<i64: 1>}, {transform_indices = @transform_7, window_bounds = array<i64: 4, 4>}, {transform_indices = @transform_8, window_bounds = array<i64: 4>}, {transform_indices = @transform_9, window_bounds = array<i64: 1, 4, 2, 128>}]} {
    %c0 = arith.constant 0 : index
    %c0_0 = arith.constant 0 : index
    %c0_1 = arith.constant 0 : index
    %c0_2 = arith.constant 0 : index
    %0 = vector.load %arg3[%c0, %c0_0, %c0_1, %c0_2] : memref<1x1x2x128xf32, #tpu.memory_space<vmem>>, vector<1x1x2x128xf32>
    %1 = vector.shape_cast %0 : vector<1x1x2x128xf32> to vector<2x128xf32>
    %c0_3 = arith.constant 0 : index
    %c0_4 = arith.constant 0 : index
    %c0_5 = arith.constant 0 : index
    %c0_6 = arith.constant 0 : index
    %2 = vector.load %arg2[%c0_3, %c0_4, %c0_5, %c0_6] : memref<1x4x2x128xf32, #tpu.memory_space<vmem>>, vector<1x1x2x128xf32>
    %3 = vector.shape_cast %2 : vector<1x1x2x128xf32> to vector<2x128xf32>
    %c0_7 = arith.constant 0 : index
    %c1 = arith.constant 1 : index
    %c0_8 = arith.constant 0 : index
    %c0_9 = arith.constant 0 : index
    %4 = vector.load %arg2[%c0_7, %c1, %c0_8, %c0_9] : memref<1x4x2x128xf32, #tpu.memory_space<vmem>>, vector<1x1x2x128xf32>
    %5 = vector.shape_cast %4 : vector<1x1x2x128xf32> to vector<2x128xf32>
    %c0_10 = arith.constant 0 : index
    %c2 = arith.constant 2 : index
    %c0_11 = arith.constant 0 : index
    %c0_12 = arith.constant 0 : index
    %6 = vector.load %arg2[%c0_10, %c2, %c0_11, %c0_12] : memref<1x4x2x128xf32, #tpu.memory_space<vmem>>, vector<1x1x2x128xf32>
    %7 = vector.shape_cast %6 : vector<1x1x2x128xf32> to vector<2x128xf32>
    %c0_13 = arith.constant 0 : index
    %c3 = arith.constant 3 : index
    %c0_14 = arith.constant 0 : index
    %c0_15 = arith.constant 0 : index
    %8 = vector.load %arg2[%c0_13, %c3, %c0_14, %c0_15] : memref<1x4x2x128xf32, #tpu.memory_space<vmem>>, vector<1x1x2x128xf32>
    %9 = vector.shape_cast %8 : vector<1x1x2x128xf32> to vector<2x128xf32>
    %c0_16 = arith.constant 0 : index
    %10 = memref.load %arg5[%c0_16] : memref<5xf32, #tpu.memory_space<smem>>
    %11 = vector.broadcast %10 : f32 to vector<2x128xf32>
    %12 = arith.mulf %11, %1 : vector<2x128xf32>
    %c0_17 = arith.constant 0 : index
    %13 = memref.load %arg6[%c0_17] : memref<5xf32, #tpu.memory_space<smem>>
    %14 = vector.broadcast %13 : f32 to vector<2x128xf32>
    %15 = arith.addf %12, %14 : vector<2x128xf32>
    %c0_18 = arith.constant 0 : index
    %c0_19 = arith.constant 0 : index
    %16 = memref.load %arg4[%c0_18, %c0_19] : memref<5x4xf32, #tpu.memory_space<smem>>
    %17 = vector.broadcast %16 : f32 to vector<2x128xf32>
    %18 = arith.mulf %17, %3 : vector<2x128xf32>
    %19 = arith.addf %15, %18 : vector<2x128xf32>
    %c0_20 = arith.constant 0 : index
    %c1_21 = arith.constant 1 : index
    %20 = memref.load %arg4[%c0_20, %c1_21] : memref<5x4xf32, #tpu.memory_space<smem>>
    %21 = vector.broadcast %20 : f32 to vector<2x128xf32>
    %22 = arith.mulf %21, %5 : vector<2x128xf32>
    %23 = arith.addf %19, %22 : vector<2x128xf32>
    %c0_22 = arith.constant 0 : index
    %c2_23 = arith.constant 2 : index
    %24 = memref.load %arg4[%c0_22, %c2_23] : memref<5x4xf32, #tpu.memory_space<smem>>
    %25 = vector.broadcast %24 : f32 to vector<2x128xf32>
    %26 = arith.mulf %25, %7 : vector<2x128xf32>
    %27 = arith.addf %23, %26 : vector<2x128xf32>
    %c0_24 = arith.constant 0 : index
    %c3_25 = arith.constant 3 : index
    %28 = memref.load %arg4[%c0_24, %c3_25] : memref<5x4xf32, #tpu.memory_space<smem>>
    %29 = vector.broadcast %28 : f32 to vector<2x128xf32>
    %30 = arith.mulf %29, %9 : vector<2x128xf32>
    %31 = arith.addf %27, %30 : vector<2x128xf32>
    %cst = arith.constant 0.000000e+00 : f32
    %32 = vector.broadcast %cst : f32 to vector<2x128xf32>
    %33 = arith.maximumf %31, %32 : vector<2x128xf32>
    %c1_26 = arith.constant 1 : index
    %34 = memref.load %arg5[%c1_26] : memref<5xf32, #tpu.memory_space<smem>>
    %35 = vector.broadcast %34 : f32 to vector<2x128xf32>
    %36 = arith.mulf %35, %1 : vector<2x128xf32>
    %c1_27 = arith.constant 1 : index
    %37 = memref.load %arg6[%c1_27] : memref<5xf32, #tpu.memory_space<smem>>
    %38 = vector.broadcast %37 : f32 to vector<2x128xf32>
    %39 = arith.addf %36, %38 : vector<2x128xf32>
    %c1_28 = arith.constant 1 : index
    %c0_29 = arith.constant 0 : index
    %40 = memref.load %arg4[%c1_28, %c0_29] : memref<5x4xf32, #tpu.memory_space<smem>>
    %41 = vector.broadcast %40 : f32 to vector<2x128xf32>
    %42 = arith.mulf %41, %3 : vector<2x128xf32>
    %43 = arith.addf %39, %42 : vector<2x128xf32>
    %c1_30 = arith.constant 1 : index
    %c1_31 = arith.constant 1 : index
    %44 = memref.load %arg4[%c1_30, %c1_31] : memref<5x4xf32, #tpu.memory_space<smem>>
    %45 = vector.broadcast %44 : f32 to vector<2x128xf32>
    %46 = arith.mulf %45, %5 : vector<2x128xf32>
    %47 = arith.addf %43, %46 : vector<2x128xf32>
    %c1_32 = arith.constant 1 : index
    %c2_33 = arith.constant 2 : index
    %48 = memref.load %arg4[%c1_32, %c2_33] : memref<5x4xf32, #tpu.memory_space<smem>>
    %49 = vector.broadcast %48 : f32 to vector<2x128xf32>
    %50 = arith.mulf %49, %7 : vector<2x128xf32>
    %51 = arith.addf %47, %50 : vector<2x128xf32>
    %c1_34 = arith.constant 1 : index
    %c3_35 = arith.constant 3 : index
    %52 = memref.load %arg4[%c1_34, %c3_35] : memref<5x4xf32, #tpu.memory_space<smem>>
    %53 = vector.broadcast %52 : f32 to vector<2x128xf32>
    %54 = arith.mulf %53, %9 : vector<2x128xf32>
    %55 = arith.addf %51, %54 : vector<2x128xf32>
    %cst_36 = arith.constant 0.000000e+00 : f32
    %56 = vector.broadcast %cst_36 : f32 to vector<2x128xf32>
    %57 = arith.maximumf %55, %56 : vector<2x128xf32>
    %c2_37 = arith.constant 2 : index
    %58 = memref.load %arg5[%c2_37] : memref<5xf32, #tpu.memory_space<smem>>
    %59 = vector.broadcast %58 : f32 to vector<2x128xf32>
    %60 = arith.mulf %59, %1 : vector<2x128xf32>
    %c2_38 = arith.constant 2 : index
    %61 = memref.load %arg6[%c2_38] : memref<5xf32, #tpu.memory_space<smem>>
    %62 = vector.broadcast %61 : f32 to vector<2x128xf32>
    %63 = arith.addf %60, %62 : vector<2x128xf32>
    %c2_39 = arith.constant 2 : index
    %c0_40 = arith.constant 0 : index
    %64 = memref.load %arg4[%c2_39, %c0_40] : memref<5x4xf32, #tpu.memory_space<smem>>
    %65 = vector.broadcast %64 : f32 to vector<2x128xf32>
    %66 = arith.mulf %65, %3 : vector<2x128xf32>
    %67 = arith.addf %63, %66 : vector<2x128xf32>
    %c2_41 = arith.constant 2 : index
    %c1_42 = arith.constant 1 : index
    %68 = memref.load %arg4[%c2_41, %c1_42] : memref<5x4xf32, #tpu.memory_space<smem>>
    %69 = vector.broadcast %68 : f32 to vector<2x128xf32>
    %70 = arith.mulf %69, %5 : vector<2x128xf32>
    %71 = arith.addf %67, %70 : vector<2x128xf32>
    %c2_43 = arith.constant 2 : index
    %c2_44 = arith.constant 2 : index
    %72 = memref.load %arg4[%c2_43, %c2_44] : memref<5x4xf32, #tpu.memory_space<smem>>
    %73 = vector.broadcast %72 : f32 to vector<2x128xf32>
    %74 = arith.mulf %73, %7 : vector<2x128xf32>
    %75 = arith.addf %71, %74 : vector<2x128xf32>
    %c2_45 = arith.constant 2 : index
    %c3_46 = arith.constant 3 : index
    %76 = memref.load %arg4[%c2_45, %c3_46] : memref<5x4xf32, #tpu.memory_space<smem>>
    %77 = vector.broadcast %76 : f32 to vector<2x128xf32>
    %78 = arith.mulf %77, %9 : vector<2x128xf32>
    %79 = arith.addf %75, %78 : vector<2x128xf32>
    %cst_47 = arith.constant 0.000000e+00 : f32
    %80 = vector.broadcast %cst_47 : f32 to vector<2x128xf32>
    %81 = arith.maximumf %79, %80 : vector<2x128xf32>
    %c3_48 = arith.constant 3 : index
    %82 = memref.load %arg5[%c3_48] : memref<5xf32, #tpu.memory_space<smem>>
    %83 = vector.broadcast %82 : f32 to vector<2x128xf32>
    %84 = arith.mulf %83, %1 : vector<2x128xf32>
    %c3_49 = arith.constant 3 : index
    %85 = memref.load %arg6[%c3_49] : memref<5xf32, #tpu.memory_space<smem>>
    %86 = vector.broadcast %85 : f32 to vector<2x128xf32>
    %87 = arith.addf %84, %86 : vector<2x128xf32>
    %c3_50 = arith.constant 3 : index
    %c0_51 = arith.constant 0 : index
    %88 = memref.load %arg4[%c3_50, %c0_51] : memref<5x4xf32, #tpu.memory_space<smem>>
    %89 = vector.broadcast %88 : f32 to vector<2x128xf32>
    %90 = arith.mulf %89, %3 : vector<2x128xf32>
    %91 = arith.addf %87, %90 : vector<2x128xf32>
    %c3_52 = arith.constant 3 : index
    %c1_53 = arith.constant 1 : index
    %92 = memref.load %arg4[%c3_52, %c1_53] : memref<5x4xf32, #tpu.memory_space<smem>>
    %93 = vector.broadcast %92 : f32 to vector<2x128xf32>
    %94 = arith.mulf %93, %5 : vector<2x128xf32>
    %95 = arith.addf %91, %94 : vector<2x128xf32>
    %c3_54 = arith.constant 3 : index
    %c2_55 = arith.constant 2 : index
    %96 = memref.load %arg4[%c3_54, %c2_55] : memref<5x4xf32, #tpu.memory_space<smem>>
    %97 = vector.broadcast %96 : f32 to vector<2x128xf32>
    %98 = arith.mulf %97, %7 : vector<2x128xf32>
    %99 = arith.addf %95, %98 : vector<2x128xf32>
    %c3_56 = arith.constant 3 : index
    %c3_57 = arith.constant 3 : index
    %100 = memref.load %arg4[%c3_56, %c3_57] : memref<5x4xf32, #tpu.memory_space<smem>>
    %101 = vector.broadcast %100 : f32 to vector<2x128xf32>
    %102 = arith.mulf %101, %9 : vector<2x128xf32>
    %103 = arith.addf %99, %102 : vector<2x128xf32>
    %cst_58 = arith.constant 0.000000e+00 : f32
    %104 = vector.broadcast %cst_58 : f32 to vector<2x128xf32>
    %105 = arith.maximumf %103, %104 : vector<2x128xf32>
    %c4 = arith.constant 4 : index
    %106 = memref.load %arg5[%c4] : memref<5xf32, #tpu.memory_space<smem>>
    %107 = vector.broadcast %106 : f32 to vector<2x128xf32>
    %108 = arith.mulf %107, %1 : vector<2x128xf32>
    %c4_59 = arith.constant 4 : index
    %109 = memref.load %arg6[%c4_59] : memref<5xf32, #tpu.memory_space<smem>>
    %110 = vector.broadcast %109 : f32 to vector<2x128xf32>
    %111 = arith.addf %108, %110 : vector<2x128xf32>
    %c4_60 = arith.constant 4 : index
    %c0_61 = arith.constant 0 : index
    %112 = memref.load %arg4[%c4_60, %c0_61] : memref<5x4xf32, #tpu.memory_space<smem>>
    %113 = vector.broadcast %112 : f32 to vector<2x128xf32>
    %114 = arith.mulf %113, %3 : vector<2x128xf32>
    %115 = arith.addf %111, %114 : vector<2x128xf32>
    %c4_62 = arith.constant 4 : index
    %c1_63 = arith.constant 1 : index
    %116 = memref.load %arg4[%c4_62, %c1_63] : memref<5x4xf32, #tpu.memory_space<smem>>
    %117 = vector.broadcast %116 : f32 to vector<2x128xf32>
    %118 = arith.mulf %117, %5 : vector<2x128xf32>
    %119 = arith.addf %115, %118 : vector<2x128xf32>
    %c4_64 = arith.constant 4 : index
    %c2_65 = arith.constant 2 : index
    %120 = memref.load %arg4[%c4_64, %c2_65] : memref<5x4xf32, #tpu.memory_space<smem>>
    %121 = vector.broadcast %120 : f32 to vector<2x128xf32>
    %122 = arith.mulf %121, %7 : vector<2x128xf32>
    %123 = arith.addf %119, %122 : vector<2x128xf32>
    %c4_66 = arith.constant 4 : index
    %c3_67 = arith.constant 3 : index
    %124 = memref.load %arg4[%c4_66, %c3_67] : memref<5x4xf32, #tpu.memory_space<smem>>
    %125 = vector.broadcast %124 : f32 to vector<2x128xf32>
    %126 = arith.mulf %125, %9 : vector<2x128xf32>
    %127 = arith.addf %123, %126 : vector<2x128xf32>
    %cst_68 = arith.constant 0.000000e+00 : f32
    %128 = vector.broadcast %cst_68 : f32 to vector<2x128xf32>
    %129 = arith.maximumf %127, %128 : vector<2x128xf32>
    %c0_69 = arith.constant 0 : index
    %130 = memref.load %arg7[%c0_69] : memref<5xf32, #tpu.memory_space<smem>>
    %131 = vector.broadcast %130 : f32 to vector<2x128xf32>
    %132 = arith.mulf %131, %33 : vector<2x128xf32>
    %c0_70 = arith.constant 0 : index
    %133 = memref.load %arg8[%c0_70] : memref<1xf32, #tpu.memory_space<smem>>
    %134 = vector.broadcast %133 : f32 to vector<2x128xf32>
    %135 = arith.addf %132, %134 : vector<2x128xf32>
    %c1_71 = arith.constant 1 : index
    %136 = memref.load %arg7[%c1_71] : memref<5xf32, #tpu.memory_space<smem>>
    %137 = vector.broadcast %136 : f32 to vector<2x128xf32>
    %138 = arith.mulf %137, %57 : vector<2x128xf32>
    %139 = arith.addf %135, %138 : vector<2x128xf32>
    %c2_72 = arith.constant 2 : index
    %140 = memref.load %arg7[%c2_72] : memref<5xf32, #tpu.memory_space<smem>>
    %141 = vector.broadcast %140 : f32 to vector<2x128xf32>
    %142 = arith.mulf %141, %81 : vector<2x128xf32>
    %143 = arith.addf %139, %142 : vector<2x128xf32>
    %c3_73 = arith.constant 3 : index
    %144 = memref.load %arg7[%c3_73] : memref<5xf32, #tpu.memory_space<smem>>
    %145 = vector.broadcast %144 : f32 to vector<2x128xf32>
    %146 = arith.mulf %145, %105 : vector<2x128xf32>
    %147 = arith.addf %143, %146 : vector<2x128xf32>
    %c4_74 = arith.constant 4 : index
    %148 = memref.load %arg7[%c4_74] : memref<5xf32, #tpu.memory_space<smem>>
    %149 = vector.broadcast %148 : f32 to vector<2x128xf32>
    %150 = arith.mulf %149, %129 : vector<2x128xf32>
    %151 = arith.addf %147, %150 : vector<2x128xf32>
    %152 = arith.negf %151 : vector<2x128xf32>
    %153 = math.exp %152 : vector<2x128xf32>
    %cst_75 = arith.constant 1.000000e+00 : f32
    %154 = vector.broadcast %cst_75 : f32 to vector<2x128xf32>
    %155 = arith.addf %154, %153 : vector<2x128xf32>
    %156 = arith.divf %154, %155 : vector<2x128xf32>
    %cst_76 = arith.constant 1.000000e+00 : f32
    %157 = vector.broadcast %cst_76 : f32 to vector<2x128xf32>
    %158 = arith.addf %156, %157 : vector<2x128xf32>
    %159 = arith.mulf %3, %158 : vector<2x128xf32>
    %160 = arith.mulf %5, %158 : vector<2x128xf32>
    %161 = arith.mulf %7, %158 : vector<2x128xf32>
    %162 = arith.mulf %9, %158 : vector<2x128xf32>
    %c0_77 = arith.constant 0 : index
    %c0_78 = arith.constant 0 : index
    %163 = memref.load %arg9[%c0_77, %c0_78] : memref<4x4xf32, #tpu.memory_space<smem>>
    %164 = vector.broadcast %163 : f32 to vector<2x128xf32>
    %165 = arith.mulf %164, %159 : vector<2x128xf32>
    %c0_79 = arith.constant 0 : index
    %166 = memref.load %arg10[%c0_79] : memref<4xf32, #tpu.memory_space<smem>>
    %167 = vector.broadcast %166 : f32 to vector<2x128xf32>
    %168 = arith.addf %165, %167 : vector<2x128xf32>
    %c0_80 = arith.constant 0 : index
    %c1_81 = arith.constant 1 : index
    %169 = memref.load %arg9[%c0_80, %c1_81] : memref<4x4xf32, #tpu.memory_space<smem>>
    %170 = vector.broadcast %169 : f32 to vector<2x128xf32>
    %171 = arith.mulf %170, %160 : vector<2x128xf32>
    %172 = arith.addf %168, %171 : vector<2x128xf32>
    %c0_82 = arith.constant 0 : index
    %c2_83 = arith.constant 2 : index
    %173 = memref.load %arg9[%c0_82, %c2_83] : memref<4x4xf32, #tpu.memory_space<smem>>
    %174 = vector.broadcast %173 : f32 to vector<2x128xf32>
    %175 = arith.mulf %174, %161 : vector<2x128xf32>
    %176 = arith.addf %172, %175 : vector<2x128xf32>
    %c0_84 = arith.constant 0 : index
    %c3_85 = arith.constant 3 : index
    %177 = memref.load %arg9[%c0_84, %c3_85] : memref<4x4xf32, #tpu.memory_space<smem>>
    %178 = vector.broadcast %177 : f32 to vector<2x128xf32>
    %179 = arith.mulf %178, %162 : vector<2x128xf32>
    %180 = arith.addf %176, %179 : vector<2x128xf32>
    %c0_86 = arith.constant 0 : index
    %c0_87 = arith.constant 0 : index
    %c0_88 = arith.constant 0 : index
    %c0_89 = arith.constant 0 : index
    %181 = vector.load %arg11[%c0_86, %c0_87, %c0_88, %c0_89] : memref<1x4x2x128xf32, #tpu.memory_space<vmem>>, vector<1x1x2x128xf32>
    %182 = vector.shape_cast %181 : vector<1x1x2x128xf32> to vector<2x128xf32>
    %183 = vector.shape_cast %180 : vector<2x128xf32> to vector<1x1x2x128xf32>
    tpu.vector_store %arg11[%c0_86, %c0_87, %c0_88, %c0_89], %183 {strides = array<i32>} : memref<1x4x2x128xf32, #tpu.memory_space<vmem>>, vector<1x1x2x128xf32>,
    %c1_90 = arith.constant 1 : index
    %c0_91 = arith.constant 0 : index
    %184 = memref.load %arg9[%c1_90, %c0_91] : memref<4x4xf32, #tpu.memory_space<smem>>
    %185 = vector.broadcast %184 : f32 to vector<2x128xf32>
    %186 = arith.mulf %185, %159 : vector<2x128xf32>
    %c1_92 = arith.constant 1 : index
    %187 = memref.load %arg10[%c1_92] : memref<4xf32, #tpu.memory_space<smem>>
    %188 = vector.broadcast %187 : f32 to vector<2x128xf32>
    %189 = arith.addf %186, %188 : vector<2x128xf32>
    %c1_93 = arith.constant 1 : index
    %c1_94 = arith.constant 1 : index
    %190 = memref.load %arg9[%c1_93, %c1_94] : memref<4x4xf32, #tpu.memory_space<smem>>
    %191 = vector.broadcast %190 : f32 to vector<2x128xf32>
    %192 = arith.mulf %191, %160 : vector<2x128xf32>
    %193 = arith.addf %189, %192 : vector<2x128xf32>
    %c1_95 = arith.constant 1 : index
    %c2_96 = arith.constant 2 : index
    %194 = memref.load %arg9[%c1_95, %c2_96] : memref<4x4xf32, #tpu.memory_space<smem>>
    %195 = vector.broadcast %194 : f32 to vector<2x128xf32>
    %196 = arith.mulf %195, %161 : vector<2x128xf32>
    %197 = arith.addf %193, %196 : vector<2x128xf32>
    %c1_97 = arith.constant 1 : index
    %c3_98 = arith.constant 3 : index
    %198 = memref.load %arg9[%c1_97, %c3_98] : memref<4x4xf32, #tpu.memory_space<smem>>
    %199 = vector.broadcast %198 : f32 to vector<2x128xf32>
    %200 = arith.mulf %199, %162 : vector<2x128xf32>
    %201 = arith.addf %197, %200 : vector<2x128xf32>
    %c0_99 = arith.constant 0 : index
    %c1_100 = arith.constant 1 : index
    %c0_101 = arith.constant 0 : index
    %c0_102 = arith.constant 0 : index
    %202 = vector.load %arg11[%c0_99, %c1_100, %c0_101, %c0_102] : memref<1x4x2x128xf32, #tpu.memory_space<vmem>>, vector<1x1x2x128xf32>
    %203 = vector.shape_cast %202 : vector<1x1x2x128xf32> to vector<2x128xf32>
    %204 = vector.shape_cast %201 : vector<2x128xf32> to vector<1x1x2x128xf32>
    tpu.vector_store %arg11[%c0_99, %c1_100, %c0_101, %c0_102], %204 {strides = array<i32>} : memref<1x4x2x128xf32, #tpu.memory_space<vmem>>, vector<1x1x2x128xf32>,
    %c2_103 = arith.constant 2 : index
    %c0_104 = arith.constant 0 : index
    %205 = memref.load %arg9[%c2_103, %c0_104] : memref<4x4xf32, #tpu.memory_space<smem>>
    %206 = vector.broadcast %205 : f32 to vector<2x128xf32>
    %207 = arith.mulf %206, %159 : vector<2x128xf32>
    %c2_105 = arith.constant 2 : index
    %208 = memref.load %arg10[%c2_105] : memref<4xf32, #tpu.memory_space<smem>>
    %209 = vector.broadcast %208 : f32 to vector<2x128xf32>
    %210 = arith.addf %207, %209 : vector<2x128xf32>
    %c2_106 = arith.constant 2 : index
    %c1_107 = arith.constant 1 : index
    %211 = memref.load %arg9[%c2_106, %c1_107] : memref<4x4xf32, #tpu.memory_space<smem>>
    %212 = vector.broadcast %211 : f32 to vector<2x128xf32>
    %213 = arith.mulf %212, %160 : vector<2x128xf32>
    %214 = arith.addf %210, %213 : vector<2x128xf32>
    %c2_108 = arith.constant 2 : index
    %c2_109 = arith.constant 2 : index
    %215 = memref.load %arg9[%c2_108, %c2_109] : memref<4x4xf32, #tpu.memory_space<smem>>
    %216 = vector.broadcast %215 : f32 to vector<2x128xf32>
    %217 = arith.mulf %216, %161 : vector<2x128xf32>
    %218 = arith.addf %214, %217 : vector<2x128xf32>
    %c2_110 = arith.constant 2 : index
    %c3_111 = arith.constant 3 : index
    %219 = memref.load %arg9[%c2_110, %c3_111] : memref<4x4xf32, #tpu.memory_space<smem>>
    %220 = vector.broadcast %219 : f32 to vector<2x128xf32>
    %221 = arith.mulf %220, %162 : vector<2x128xf32>
    %222 = arith.addf %218, %221 : vector<2x128xf32>
    %c0_112 = arith.constant 0 : index
    %c2_113 = arith.constant 2 : index
    %c0_114 = arith.constant 0 : index
    %c0_115 = arith.constant 0 : index
    %223 = vector.load %arg11[%c0_112, %c2_113, %c0_114, %c0_115] : memref<1x4x2x128xf32, #tpu.memory_space<vmem>>, vector<1x1x2x128xf32>
    %224 = vector.shape_cast %223 : vector<1x1x2x128xf32> to vector<2x128xf32>
    %225 = vector.shape_cast %222 : vector<2x128xf32> to vector<1x1x2x128xf32>
    tpu.vector_store %arg11[%c0_112, %c2_113, %c0_114, %c0_115], %225 {strides = array<i32>} : memref<1x4x2x128xf32, #tpu.memory_space<vmem>>, vector<1x1x2x128xf32>,
    %c3_116 = arith.constant 3 : index
    %c0_117 = arith.constant 0 : index
    %226 = memref.load %arg9[%c3_116, %c0_117] : memref<4x4xf32, #tpu.memory_space<smem>>
    %227 = vector.broadcast %226 : f32 to vector<2x128xf32>
    %228 = arith.mulf %227, %159 : vector<2x128xf32>
    %c3_118 = arith.constant 3 : index
    %229 = memref.load %arg10[%c3_118] : memref<4xf32, #tpu.memory_space<smem>>
    %230 = vector.broadcast %229 : f32 to vector<2x128xf32>
    %231 = arith.addf %228, %230 : vector<2x128xf32>
    %c3_119 = arith.constant 3 : index
    %c1_120 = arith.constant 1 : index
    %232 = memref.load %arg9[%c3_119, %c1_120] : memref<4x4xf32, #tpu.memory_space<smem>>
    %233 = vector.broadcast %232 : f32 to vector<2x128xf32>
    %234 = arith.mulf %233, %160 : vector<2x128xf32>
    %235 = arith.addf %231, %234 : vector<2x128xf32>
    %c3_121 = arith.constant 3 : index
    %c2_122 = arith.constant 2 : index
    %236 = memref.load %arg9[%c3_121, %c2_122] : memref<4x4xf32, #tpu.memory_space<smem>>
    %237 = vector.broadcast %236 : f32 to vector<2x128xf32>
    %238 = arith.mulf %237, %161 : vector<2x128xf32>
    %239 = arith.addf %235, %238 : vector<2x128xf32>
    %c3_123 = arith.constant 3 : index
    %c3_124 = arith.constant 3 : index
    %240 = memref.load %arg9[%c3_123, %c3_124] : memref<4x4xf32, #tpu.memory_space<smem>>
    %241 = vector.broadcast %240 : f32 to vector<2x128xf32>
    %242 = arith.mulf %241, %162 : vector<2x128xf32>
    %243 = arith.addf %239, %242 : vector<2x128xf32>
    %c0_125 = arith.constant 0 : index
    %c3_126 = arith.constant 3 : index
    %c0_127 = arith.constant 0 : index
    %c0_128 = arith.constant 0 : index
    %244 = vector.load %arg11[%c0_125, %c3_126, %c0_127, %c0_128] : memref<1x4x2x128xf32, #tpu.memory_space<vmem>>, vector<1x1x2x128xf32>
    %245 = vector.shape_cast %244 : vector<1x1x2x128xf32> to vector<2x128xf32>
    %246 = vector.shape_cast %243 : vector<2x128xf32> to vector<1x1x2x128xf32>
    tpu.vector_store %arg11[%c0_125, %c3_126, %c0_127, %c0_128], %246 {strides = array<i32>} : memref<1x4x2x128xf32, #tpu.memory_space<vmem>>, vector<1x1x2x128xf32>,
    return
  }
  func.func @transform_0(%arg0: i32, %arg1: i32) -> (i32, i32, i32, i32) {
    %c0_i32 = arith.constant 0 : i32
    %c0_i32_0 = arith.constant 0 : i32
    %c0_i32_1 = arith.constant 0 : i32
    return %arg0, %c0_i32, %arg1, %c0_i32_0 : i32, i32, i32, i32
  }
  func.func @transform_1(%arg0: i32, %arg1: i32) -> (i32, i32, i32, i32) {
    %c0_i32 = arith.constant 0 : i32
    %c0_i32_0 = arith.constant 0 : i32
    %c0_i32_1 = arith.constant 0 : i32
    return %arg0, %c0_i32, %arg1, %c0_i32_0 : i32, i32, i32, i32
  }
  func.func @transform_2(%arg0: i32, %arg1: i32) -> (i32, i32) {
    %c0_i32 = arith.constant 0 : i32
    %c0_i32_0 = arith.constant 0 : i32
    %c0_i32_1 = arith.constant 0 : i32
    return %c0_i32, %c0_i32_0 : i32, i32
  }
  func.func @transform_3(%arg0: i32, %arg1: i32) -> i32 {
    %c0_i32 = arith.constant 0 : i32
    %c0_i32_0 = arith.constant 0 : i32
    return %c0_i32 : i32
  }
  func.func @transform_4(%arg0: i32, %arg1: i32) -> i32 {
    %c0_i32 = arith.constant 0 : i32
    %c0_i32_0 = arith.constant 0 : i32
    return %c0_i32 : i32
  }
  func.func @transform_5(%arg0: i32, %arg1: i32) -> i32 {
    %c0_i32 = arith.constant 0 : i32
    %c0_i32_0 = arith.constant 0 : i32
    return %c0_i32 : i32
  }
  func.func @transform_6(%arg0: i32, %arg1: i32) -> i32 {
    %c0_i32 = arith.constant 0 : i32
    %c0_i32_0 = arith.constant 0 : i32
    return %c0_i32 : i32
  }
  func.func @transform_7(%arg0: i32, %arg1: i32) -> (i32, i32) {
    %c0_i32 = arith.constant 0 : i32
    %c0_i32_0 = arith.constant 0 : i32
    %c0_i32_1 = arith.constant 0 : i32
    return %c0_i32, %c0_i32_0 : i32, i32
  }
  func.func @transform_8(%arg0: i32, %arg1: i32) -> i32 {
    %c0_i32 = arith.constant 0 : i32
    %c0_i32_0 = arith.constant 0 : i32
    return %c0_i32 : i32
  }
  func.func @transform_9(%arg0: i32, %arg1: i32) -> (i32, i32, i32, i32) {
    %c0_i32 = arith.constant 0 : i32
    %c0_i32_0 = arith.constant 0 : i32
    %c0_i32_1 = arith.constant 0 : i32
    return %arg0, %c0_i32, %arg1, %c0_i32_0 : i32, i32, i32, i32
  }
}

</mosaic_0001>

<llo_original>
// kernel: guide_flow_forward.2
$region0: #{guide_flow_forward.2}
  #allocation0 [shape = 'u32[]', space=smem, size = 0x4, offset = 0x4, fixed_abs, tag = 'smem constant byte address 0x4 - core index']
  #allocation1 [shape = 'u32[144,128]{1,0:T(1,128)}', space=vmem, size = 0x12000, scoped, tag = 'internal scratch']
  #allocation2 [shape = 'f32[1]{0:T(128)S(6)}', space=smem, size = 0x200, scoped, tag = 'scoped memory for guide_flow_forward.2']
  %s0 = inlined_call_operand.vmem [shape: f32[2,8,1,128], index: 0, kind: input, shape index: {}]
  %s1 = inlined_call_operand.vmem [shape: f32[8], index: 1, kind: input, shape index: {}]
  %s2 = inlined_call_operand.<no memory space> [shape: f32[1], index: 2, kind: input, shape index: {}]
  %s3 = inlined_call_operand.vmem [shape: f32[2,1,1,128], index: 3, kind: output, shape index: {}]
  %s4 = sld [smem:[#allocation0]]
  $region49: #{guide_flow_forward.2} parent=0
    _
  %s6 = ssub.s32 1, %s4
  %s7 = scalar_select 0, %s6, %s4
  %8 = sst [smem:[#allocation2]] %s2
  $region1: #{guide_flow_forward.2} parent=0
    #allocation3 [shape = 'u8[512]{0}', space=smem, size = 0x200, scoped, tag = 'input window, operand 1, single buffered']
    #allocation4 [shape = 's32[2]{0}', space=sflag, size = 0x8, scoped, tag = 'scoped memory for guide_flow_forward.2']
    %9 = vsyncpa [#allocation4], 0
    loop: start=0, step=1, limit=4
    $region2: #{guide_flow_forward.2} parent=1 // loop_pre_header
      _
    $region3: #{guide_flow_forward.2} parent=1 // loop_header
      %s11 = sphi 0, %s15
      %p12 = scmp.ge.s32.totalorder %s11, 4
      %s18 = sphi 0, %s30
      %s19 = sphi 0, %s26
      %s20 = sphi 0, %s18
      %s21 = sphi 0, %s19
      %s22 = sphi 0, %s20
      %s23 = sphi 0, %s21
      %s35 = sphi 0, %s37
      %s38 = sphi 0, %s35
      %s39 = sphi 0, %s38
      %s55 = sphi 0, %s39
      %s59 = sphi 0, %s59
      %s61 = sphi 0, %s59
      %s62 = sphi 0, %s61
      %s76 = sphi 0, %s62
      %s80 = sphi 0, %s80
      %s82 = sphi 0, %s80
      %s83 = sphi 0, %s82
      %s97 = sphi 0, %s83
      %s105 = sphi 0, %s107
      %s108 = sphi 0, %s105
      %s109 = sphi 0, %s108
      %s125 = sphi 0, %s109
    $region4: #{guide_flow_forward.2} parent=1 // loop_header_branch
      %14 = sbr.rel (%p12) target = $region8
    $region5: #{guide_flow_forward.2} parent=1 // loop_body
      %s16 = ssub.s32 %s11, 1
      %s17 = ssub.s32 %s11, 2
      %s24 = sadd.s32 1, %s19
      %p25 = scmp.ge.s32.totalorder %s24, 1
      %s26 = scalar_select %p25, 0, %s24
      %s27 = sadd.s32 1, %s18
      %s28 = scalar_select %p25, %s27, %s18
      %p29 = scmp.ge.s32.totalorder %s28, 2
      %s30 = scalar_select %p29, 0, %s28
      %s31 = ssub.s32 %s18, %s30
      %s32 = ssub.s32 %s19, %s26
      %s33 = sor.u32 %s31, %s32
      %p34 = scmp.eq.s32.totalorder %s33, 0
      %s36 = sadd.s32 %s35, 1
      %s37 = scalar_select %p34, %s35, %s36
      %p40 = pneg %p34
      %p41 = scmp.eq.s32.totalorder %s11, 1
      %p42 = por %p40, %p41
      %p43 = scmp.ne.s32.totalorder %s35, %s38
      %p44 = scmp.eq.s32.totalorder %s11, 0
      %p45 = por %p43, %p44
      %p46 = scmp.ne.s32.totalorder %s35, %s38
      %p47 = scmp.eq.s32.totalorder %s16, 1
      %p48 = por %p46, %p47
      %p49 = scmp.ne.s32.totalorder %s38, %s39
      %p50 = scmp.eq.s32.totalorder %s16, 0
      %p51 = por %p49, %p50
      %p52 = scmp.ne.s32.totalorder %s38, %s39
      %p53 = scmp.eq.s32.totalorder %s17, 1
      %p54 = por %p52, %p53
      %p56 = scmp.ne.s32.totalorder %s39, %s55
      %p57 = scmp.eq.s32.totalorder %s17, 0
      %p58 = por %p56, %p57
      %s60 = sadd.s32 %s59, 1
      %p63 = scmp.eq.s32.totalorder %s11, 1
      %p64 = scmp.ne.s32.totalorder %s59, %s61
      %p65 = scmp.eq.s32.totalorder %s11, 0
      %p66 = por %p64, %p65
      %p67 = scmp.ne.s32.totalorder %s59, %s61
      %p68 = scmp.eq.s32.totalorder %s16, 1
      %p69 = por %p67, %p68
      %p70 = scmp.ne.s32.totalorder %s61, %s62
      %p71 = scmp.eq.s32.totalorder %s16, 0
      %p72 = por %p70, %p71
      %p73 = scmp.ne.s32.totalorder %s61, %s62
      %p74 = scmp.eq.s32.totalorder %s17, 1
      %p75 = por %p73, %p74
      %p77 = scmp.ne.s32.totalorder %s62, %s76
      %p78 = scmp.eq.s32.totalorder %s17, 0
      %p79 = por %p77, %p78
      %s81 = sadd.s32 %s80, 1
      %p84 = scmp.eq.s32.totalorder %s11, 1
      %p85 = scmp.ne.s32.totalorder %s80, %s82
      %p86 = scmp.eq.s32.totalorder %s11, 0
      %p87 = por %p85, %p86
      %p88 = scmp.ne.s32.totalorder %s80, %s82
      %p89 = scmp.eq.s32.totalorder %s16, 1
      %p90 = por %p88, %p89
      %p91 = scmp.ne.s32.totalorder %s82, %s83
      %p92 = scmp.eq.s32.totalorder %s16, 0
      %p93 = por %p91, %p92
      %p94 = scmp.ne.s32.totalorder %s82, %s83
      %p95 = scmp.eq.s32.totalorder %s17, 1
      %p96 = por %p94, %p95
      %p98 = scmp.ne.s32.totalorder %s83, %s97
      %p99 = scmp.eq.s32.totalorder %s17, 0
      %p100 = por %p98, %p99
      %s101 = ssub.s32 %s18, %s30
      %s102 = ssub.s32 %s19, %s26
      %s103 = sor.u32 %s101, %s102
      %p104 = scmp.eq.s32.totalorder %s103, 0
      %s106 = sadd.s32 %s105, 1
      %s107 = scalar_select %p104, %s105, %s106
      %p110 = pneg %p104
      %p111 = scmp.eq.s32.totalorder %s11, 1
      %p112 = por %p110, %p111
      %p113 = scmp.ne.s32.totalorder %s105, %s108
      %p114 = scmp.eq.s32.totalorder %s11, 0
      %p115 = por %p113, %p114
      %p116 = scmp.ne.s32.totalorder %s105, %s108
      %p117 = scmp.eq.s32.totalorder %s16, 1
      %p118 = por %p116, %p117
      %p119 = scmp.ne.s32.totalorder %s108, %s109
      %p120 = scmp.eq.s32.totalorder %s16, 0
      %p121 = por %p119, %p120
      %p122 = scmp.ne.s32.totalorder %s108, %s109
      %p123 = scmp.eq.s32.totalorder %s17, 1
      %p124 = por %p122, %p123
      %p126 = scmp.ne.s32.totalorder %s109, %s125
      %p127 = scmp.eq.s32.totalorder %s17, 0
      %p128 = por %p126, %p127
      %p129 = scmp.le.s32.totalorder 1, %s11
      %p130 = scmp.lt.s32.totalorder %s11, 3
      %p131 = pnand %p129, %p130
      %p132 = pneg %p131
      // Predicated region
      $region9: #{guide_flow_forward.2} parent=5 // pred_check
        _
      $region10: #{guide_flow_forward.2} parent=5 // pred_check_branch
        %134 = sbr.rel (%p131) target = $region12
      $region11: #{guide_flow_forward.2} parent=5 // pred_region
        %s135 = ssub.s32 %s11, 1
        // Predicated region
        $region13: #{guide_flow_forward.2} parent=11 // pred_check
          %p136 = pneg %p72
        $region14: #{guide_flow_forward.2} parent=11 // pred_check_branch
          %138 = sbr.rel (%p136) target = $region16
        $region15: #{guide_flow_forward.2} parent=11 // pred_region
          %s140 = ssub.s32 16, 16
          %141 = vsyncadd [#allocation4], %s140
          %s143 = sshll.u32 %s1, 4
          %s144 = int_to_ptr.vmem [resolvable:$true] %s143
          %146 = dma.vmem_to_smem %s144, 16, [#allocation3], [#allocation4]
        $region16: #{guide_flow_forward.2} parent=11 // pred_fallthru
          _
        // Predicated region
        $region17: #{guide_flow_forward.2} parent=11 // pred_check
          %p147 = pneg %p93
        $region18: #{guide_flow_forward.2} parent=11 // pred_check_branch
          %149 = sbr.rel (%p147) target = $region20
        $region19: #{guide_flow_forward.2} parent=11 // pred_region
          _
        $region20: #{guide_flow_forward.2} parent=11 // pred_fallthru
          _
      $region12: #{guide_flow_forward.2} parent=5 // pred_fallthru
        _
      %p150 = scmp.lt.s32.totalorder %s11, 2
      // Predicated region
      $region21: #{guide_flow_forward.2} parent=5 // pred_check
        %p151 = pneg %p150
      $region22: #{guide_flow_forward.2} parent=5 // pred_check_branch
        %153 = sbr.rel (%p151) target = $region24
      $region23: #{guide_flow_forward.2} parent=5 // pred_region
        // Predicated region
        $region25: #{guide_flow_forward.2} parent=23 // pred_check
          %p154 = pneg %p45
        $region26: #{guide_flow_forward.2} parent=23 // pred_check_branch
          %156 = sbr.rel (%p154) target = $region28
        $region27: #{guide_flow_forward.2} parent=23 // pred_region
          %p157 = scmp.lt.s32.totalorder %s18, 1
          %s158 = scalar_select %p157, %s18, 1
          %p159 = scmp.lt.s32.totalorder %s19, 0
          %s160 = scalar_select %p159, %s19, 0
          %s161 = smul.addr %s158, 8
          %s162 = sadd.s32 %s160, %s161
          %s163 = scalar_lea.vmem %s0, %s162
        $region28: #{guide_flow_forward.2} parent=23 // pred_fallthru
          _
      $region24: #{guide_flow_forward.2} parent=5 // pred_fallthru
        _
      %p164 = scmp.le.s32.totalorder 1, %s11
      %p165 = scmp.lt.s32.totalorder %s11, 3
      %p166 = pnand %p164, %p165
      %p167 = pneg %p166
      // Predicated region
      $region29: #{guide_flow_forward.2} parent=5 // pred_check
        _
      $region30: #{guide_flow_forward.2} parent=5 // pred_check_branch
        %169 = sbr.rel (%p166) target = $region32
      $region31: #{guide_flow_forward.2} parent=5 // pred_region
        %s170 = ssub.s32 %s11, 1
        // Predicated region
        $region33: #{guide_flow_forward.2} parent=31 // pred_check
          %p171 = pneg %p72
        $region34: #{guide_flow_forward.2} parent=31 // pred_check_branch
          %173 = sbr.rel (%p171) target = $region36
        $region35: #{guide_flow_forward.2} parent=31 // pred_region
          %174 = dma.done [#allocation4], 16
        $region36: #{guide_flow_forward.2} parent=31 // pred_fallthru
          _
        %175 = sfence
        %p176 = scmp.lt.s32.totalorder %s20, 1
        %s177 = scalar_select %p176, %s20, 1
        %p178 = scmp.lt.s32.totalorder %s21, 0
        %s179 = scalar_select %p178, %s21, 0
        %s180 = smul.addr %s177, 8
        %s181 = sadd.s32 %s179, %s180
        %s182 = scalar_lea.vmem %s0, %s181
        %p183 = pneg %p51
        %p184 = pneg %p48
        %p185 = pneg %p72
        %p186 = pneg %p69
        %p187 = pneg %p93
        %p188 = pneg %p90
        %p189 = pneg %p121
        %p190 = pneg %p118
        %p191 = scmp.lt.s32.totalorder %s20, 1
        %s192 = scalar_select %p191, %s20, 1
        %p193 = scmp.lt.s32.totalorder %s21, 0
        %s194 = scalar_select %p193, %s21, 0
        %s195 = sadd.s32 %s194, %s192
        %s196 = scalar_lea.vmem %s3, %s195
        %p197 = scmp.lt.s32.totalorder %s20, 1
        %s198 = scalar_select %p197, %s20, 1
        %p199 = scmp.lt.s32.totalorder %s21, 0
        %s200 = scalar_select %p199, %s21, 0
        %s201 = smul.addr %s198, 8
        %s202 = sadd.s32 %s200, %s201
        %s203 = scalar_lea.vmem %s0, %s202
        %p204 = scmp.lt.s32.totalorder %s20, 1
        %s205 = scalar_select %p204, %s20, 1
        %p206 = scmp.lt.s32.totalorder %s21, 0
        %s207 = scalar_select %p206, %s21, 0
        %s208 = sadd.s32 %s207, %s205
        %s209 = scalar_lea.vmem %s3, %s208
        %s210 = sld [smem:[#allocation3]]
        %v211 = vld [vmem:[%s203] sm:$0x1]
        %v212 = vstv %s210
        %v213 = vmul.f32 %v212, %v211
        %s214 = sld [smem:[#allocation2]]
        %v215 = vstv %s214
        %v216 = vadd.f32 %v213, %v215
        %s217 = sld [smem:[#allocation3 + $0x1]]
        %s218 = scalar_lea.vmem %s203, 1
        %v219 = vld [vmem:[%s218] sm:$0x1]
        %v220 = vstv %s217
        %v221 = vmul.f32 %v220, %v219
        %v222 = vadd.f32 %v216, %v221
        %s223 = sld [smem:[#allocation3 + $0x2]]
        %s224 = scalar_lea.vmem %s203, 2
        %v225 = vld [vmem:[%s224] sm:$0x1]
        %v226 = vstv %s223
        %v227 = vmul.f32 %v226, %v225
        %v228 = vadd.f32 %v222, %v227
        %s229 = sld [smem:[#allocation3 + $0x3]]
        %s230 = scalar_lea.vmem %s203, 3
        %v231 = vld [vmem:[%s230] sm:$0x1]
        %v232 = vstv %s229
        %v233 = vmul.f32 %v232, %v231
        %v234 = vadd.f32 %v228, %v233
        %s235 = sld [smem:[#allocation3 + $0x4]]
        %s236 = scalar_lea.vmem %s203, 4
        %v237 = vld [vmem:[%s236] sm:$0x1]
        %v238 = vstv %s235
        %v239 = vmul.f32 %v238, %v237
        %v240 = vadd.f32 %v234, %v239
        %s241 = sld [smem:[#allocation3 + $0x5]]
        %s242 = scalar_lea.vmem %s203, 5
        %v243 = vld [vmem:[%s242] sm:$0x1]
        %v244 = vstv %s241
        %v245 = vmul.f32 %v244, %v243
        %v246 = vadd.f32 %v240, %v245
        %s247 = sld [smem:[#allocation3 + $0x6]]
        %s248 = scalar_lea.vmem %s203, 6
        %v249 = vld [vmem:[%s248] sm:$0x1]
        %v250 = vstv %s247
        %v251 = vmul.f32 %v250, %v249
        %v252 = vadd.f32 %v246, %v251
        %s253 = sld [smem:[#allocation3 + $0x7]]
        %s254 = scalar_lea.vmem %s203, 7
        %v255 = vld [vmem:[%s254] sm:$0x1]
        %v256 = vstv %s253
        %v257 = vmul.f32 %v256, %v255
        %v258 = vadd.f32 %v252, %v257
        %259 = vst [vmem:[%s209] sm:$0x1] %v258
        %p260 = scmp.lt.s32.totalorder %s20, 1
        %s261 = scalar_select %p260, %s20, 1
        %p262 = scmp.lt.s32.totalorder %s21, 0
        %s263 = scalar_select %p262, %s21, 0
        %s264 = sadd.s32 %s263, %s261
        %s265 = scalar_lea.vmem %s3, %s264
        // Predicated region
        $region37: #{guide_flow_forward.2} parent=31 // pred_check
          %p266 = pneg %p118
        $region38: #{guide_flow_forward.2} parent=31 // pred_check_branch
          %268 = sbr.rel (%p266) target = $region40
        $region39: #{guide_flow_forward.2} parent=31 // pred_region
          _
        $region40: #{guide_flow_forward.2} parent=31 // pred_fallthru
          _
      $region32: #{guide_flow_forward.2} parent=5 // pred_fallthru
        _
      %p269 = scmp.le.s32.totalorder 2, %s11
      // Predicated region
      $region41: #{guide_flow_forward.2} parent=5 // pred_check
        %p270 = pneg %p269
      $region42: #{guide_flow_forward.2} parent=5 // pred_check_branch
        %272 = sbr.rel (%p270) target = $region44
      $region43: #{guide_flow_forward.2} parent=5 // pred_region
        %s273 = ssub.s32 %s11, 2
        // Predicated region
        $region45: #{guide_flow_forward.2} parent=43 // pred_check
          %p274 = pneg %p124
        $region46: #{guide_flow_forward.2} parent=43 // pred_check_branch
          %276 = sbr.rel (%p274) target = $region48
        $region47: #{guide_flow_forward.2} parent=43 // pred_region
          %p277 = scmp.lt.s32.totalorder %s22, 1
          %s278 = scalar_select %p277, %s22, 1
          %p279 = scmp.lt.s32.totalorder %s23, 0
          %s280 = scalar_select %p279, %s23, 0
          %s281 = sadd.s32 %s280, %s278
          %s282 = scalar_lea.vmem %s3, %s281
        $region48: #{guide_flow_forward.2} parent=43 // pred_fallthru
          _
      $region44: #{guide_flow_forward.2} parent=5 // pred_fallthru
        _
    $region6: #{guide_flow_forward.2} parent=1 // loop_footer
      %s15 = sadd.s32 1, %s11
    $region7: #{guide_flow_forward.2} parent=1 // loop_footer_branch
      %10 = sbr.rel target = $region3
    $region8: #{guide_flow_forward.2} parent=1 // loop_exit
      _
    %283 = vsyncpa [#allocation4], 1
    %s284 = scalar_lea.sflag [#allocation4], 1
    %285 = vsyncpa %s284, 1

// kernel: guide_flow_forward.3
$region0: #{guide_flow_forward.3}
  #allocation0 [shape = 'u32[]', space=smem, size = 0x4, offset = 0x4, fixed_abs, tag = 'smem constant byte address 0x4 - core index']
  #allocation1 [shape = 'u32[144,128]{1,0:T(1,128)}', space=vmem, size = 0x12000, scoped, tag = 'internal scratch']
  #allocation2 [shape = 'f32[1]{0:T(128)S(6)}', space=smem, size = 0x200, scoped, tag = 'scoped memory for guide_flow_forward.3']
  %s0 = inlined_call_operand.vmem [shape: f32[2,4,2,128], index: 0, kind: input, shape index: {}]
  %s1 = inlined_call_operand.vmem [shape: f32[2,1,2,128], index: 1, kind: input, shape index: {}]
  %s2 = inlined_call_operand.vmem [shape: f32[5,4], index: 2, kind: input, shape index: {}]
  %s3 = inlined_call_operand.vmem [shape: f32[5], index: 3, kind: input, shape index: {}]
  %s4 = inlined_call_operand.vmem [shape: f32[5], index: 4, kind: input, shape index: {}]
  %s5 = inlined_call_operand.vmem [shape: f32[5], index: 5, kind: input, shape index: {}]
  %s6 = inlined_call_operand.<no memory space> [shape: f32[1], index: 6, kind: input, shape index: {}]
  %s7 = inlined_call_operand.vmem [shape: f32[4,4], index: 7, kind: input, shape index: {}]
  %s8 = inlined_call_operand.vmem [shape: f32[4], index: 8, kind: input, shape index: {}]
  %s9 = inlined_call_operand.vmem [shape: f32[2,4,2,128], index: 9, kind: output, shape index: {}]
  %s10 = sld [smem:[#allocation0]]
  $region93: #{guide_flow_forward.3} parent=0
    _
  %s12 = ssub.s32 1, %s10
  %s13 = scalar_select 0, %s12, %s10
  %14 = sst [smem:[#allocation2]] %s6
  $region1: #{guide_flow_forward.3} parent=0
    #allocation3 [shape = 'u8[4096]{0}', space=smem, size = 0x1000, scoped, tag = 'input window, operand 2, single buffered']
    #allocation4 [shape = 's32[2]{0}', space=sflag, size = 0x8, scoped, tag = 'scoped memory for guide_flow_forward.3']
    #allocation5 [shape = 'u8[512]{0}', space=smem, size = 0x200, scoped, tag = 'input window, operand 3, single buffered']
    #allocation6 [shape = 's32[1]{0}', space=sflag, size = 0x4, scoped, tag = 'scoped memory for guide_flow_forward.3']
    #allocation7 [shape = 'u8[512]{0}', space=smem, size = 0x200, scoped, tag = 'input window, operand 4, single buffered']
    #allocation8 [shape = 'u8[512]{0}', space=smem, size = 0x200, scoped, tag = 'input window, operand 5, single buffered']
    #allocation9 [shape = 's32[1]{0}', space=sflag, size = 0x4, scoped, tag = 'scoped memory for guide_flow_forward.3']
    #allocation10 [shape = 'u8[2048]{0}', space=smem, size = 0x800, scoped, tag = 'input window, operand 7, single buffered']
    #allocation11 [shape = 'u8[512]{0}', space=smem, size = 0x200, scoped, tag = 'input window, operand 8, single buffered']
    #allocation12 [shape = 's32[1]{0}', space=sflag, size = 0x4, scoped, tag = 'scoped memory for guide_flow_forward.3']
    %15 = vsyncpa [#allocation4], 0
    %16 = vsyncpa [#allocation6], 0
    %17 = vsyncpa [#allocation9], 0
    %18 = vsyncpa [#allocation12], 0
    loop: start=0, step=1, limit=4
    $region2: #{guide_flow_forward.3} parent=1 // loop_pre_header
      _
    $region3: #{guide_flow_forward.3} parent=1 // loop_header
      %s20 = sphi 0, %s24
      %p21 = scmp.ge.s32.totalorder %s20, 4
      %s27 = sphi 0, %s39
      %s28 = sphi 0, %s35
      %s29 = sphi 0, %s27
      %s30 = sphi 0, %s28
      %s31 = sphi 0, %s29
      %s32 = sphi 0, %s30
      %s44 = sphi 0, %s46
      %s47 = sphi 0, %s44
      %s48 = sphi 0, %s47
      %s64 = sphi 0, %s48
      %s72 = sphi 0, %s74
      %s75 = sphi 0, %s72
      %s76 = sphi 0, %s75
      %s92 = sphi 0, %s76
      %s96 = sphi 0, %s96
      %s98 = sphi 0, %s96
      %s99 = sphi 0, %s98
      %s113 = sphi 0, %s99
      %s117 = sphi 0, %s117
      %s119 = sphi 0, %s117
      %s120 = sphi 0, %s119
      %s134 = sphi 0, %s120
      %s138 = sphi 0, %s138
      %s140 = sphi 0, %s138
      %s141 = sphi 0, %s140
      %s155 = sphi 0, %s141
      %s159 = sphi 0, %s159
      %s161 = sphi 0, %s159
      %s162 = sphi 0, %s161
      %s176 = sphi 0, %s162
      %s180 = sphi 0, %s180
      %s182 = sphi 0, %s180
      %s183 = sphi 0, %s182
      %s197 = sphi 0, %s183
      %s201 = sphi 0, %s201
      %s203 = sphi 0, %s201
      %s204 = sphi 0, %s203
      %s218 = sphi 0, %s204
      %s222 = sphi 0, %s222
      %s224 = sphi 0, %s222
      %s225 = sphi 0, %s224
      %s239 = sphi 0, %s225
      %s247 = sphi 0, %s249
      %s250 = sphi 0, %s247
      %s251 = sphi 0, %s250
      %s267 = sphi 0, %s251
    $region4: #{guide_flow_forward.3} parent=1 // loop_header_branch
      %23 = sbr.rel (%p21) target = $region8
    $region5: #{guide_flow_forward.3} parent=1 // loop_body
      %s25 = ssub.s32 %s20, 1
      %s26 = ssub.s32 %s20, 2
      %s33 = sadd.s32 1, %s28
      %p34 = scmp.ge.s32.totalorder %s33, 1
      %s35 = scalar_select %p34, 0, %s33
      %s36 = sadd.s32 1, %s27
      %s37 = scalar_select %p34, %s36, %s27
      %p38 = scmp.ge.s32.totalorder %s37, 2
      %s39 = scalar_select %p38, 0, %s37
      %s40 = ssub.s32 %s27, %s39
      %s41 = ssub.s32 %s28, %s35
      %s42 = sor.u32 %s40, %s41
      %p43 = scmp.eq.s32.totalorder %s42, 0
      %s45 = sadd.s32 %s44, 1
      %s46 = scalar_select %p43, %s44, %s45
      %p49 = pneg %p43
      %p50 = scmp.eq.s32.totalorder %s20, 1
      %p51 = por %p49, %p50
      %p52 = scmp.ne.s32.totalorder %s44, %s47
      %p53 = scmp.eq.s32.totalorder %s20, 0
      %p54 = por %p52, %p53
      %p55 = scmp.ne.s32.totalorder %s44, %s47
      %p56 = scmp.eq.s32.totalorder %s25, 1
      %p57 = por %p55, %p56
      %p58 = scmp.ne.s32.totalorder %s47, %s48
      %p59 = scmp.eq.s32.totalorder %s25, 0
      %p60 = por %p58, %p59
      %p61 = scmp.ne.s32.totalorder %s47, %s48
      %p62 = scmp.eq.s32.totalorder %s26, 1
      %p63 = por %p61, %p62
      %p65 = scmp.ne.s32.totalorder %s48, %s64
      %p66 = scmp.eq.s32.totalorder %s26, 0
      %p67 = por %p65, %p66
      %s68 = ssub.s32 %s27, %s39
      %s69 = ssub.s32 %s28, %s35
      %s70 = sor.u32 %s68, %s69
      %p71 = scmp.eq.s32.totalorder %s70, 0
      %s73 = sadd.s32 %s72, 1
      %s74 = scalar_select %p71, %s72, %s73
      %p77 = pneg %p71
      %p78 = scmp.eq.s32.totalorder %s20, 1
      %p79 = por %p77, %p78
      %p80 = scmp.ne.s32.totalorder %s72, %s75
      %p81 = scmp.eq.s32.totalorder %s20, 0
      %p82 = por %p80, %p81
      %p83 = scmp.ne.s32.totalorder %s72, %s75
      %p84 = scmp.eq.s32.totalorder %s25, 1
      %p85 = por %p83, %p84
      %p86 = scmp.ne.s32.totalorder %s75, %s76
      %p87 = scmp.eq.s32.totalorder %s25, 0
      %p88 = por %p86, %p87
      %p89 = scmp.ne.s32.totalorder %s75, %s76
      %p90 = scmp.eq.s32.totalorder %s26, 1
      %p91 = por %p89, %p90
      %p93 = scmp.ne.s32.totalorder %s76, %s92
      %p94 = scmp.eq.s32.totalorder %s26, 0
      %p95 = por %p93, %p94
      %s97 = sadd.s32 %s96, 1
      %p100 = scmp.eq.s32.totalorder %s20, 1
      %p101 = scmp.ne.s32.totalorder %s96, %s98
      %p102 = scmp.eq.s32.totalorder %s20, 0
      %p103 = por %p101, %p102
      %p104 = scmp.ne.s32.totalorder %s96, %s98
      %p105 = scmp.eq.s32.totalorder %s25, 1
      %p106 = por %p104, %p105
      %p107 = scmp.ne.s32.totalorder %s98, %s99
      %p108 = scmp.eq.s32.totalorder %s25, 0
      %p109 = por %p107, %p108
      %p110 = scmp.ne.s32.totalorder %s98, %s99
      %p111 = scmp.eq.s32.totalorder %s26, 1
      %p112 = por %p110, %p111
      %p114 = scmp.ne.s32.totalorder %s99, %s113
      %p115 = scmp.eq.s32.totalorder %s26, 0
      %p116 = por %p114, %p115
      %s118 = sadd.s32 %s117, 1
      %p121 = scmp.eq.s32.totalorder %s20, 1
      %p122 = scmp.ne.s32.totalorder %s117, %s119
      %p123 = scmp.eq.s32.totalorder %s20, 0
      %p124 = por %p122, %p123
      %p125 = scmp.ne.s32.totalorder %s117, %s119
      %p126 = scmp.eq.s32.totalorder %s25, 1
      %p127 = por %p125, %p126
      %p128 = scmp.ne.s32.totalorder %s119, %s120
      %p129 = scmp.eq.s32.totalorder %s25, 0
      %p130 = por %p128, %p129
      %p131 = scmp.ne.s32.totalorder %s119, %s120
      %p132 = scmp.eq.s32.totalorder %s26, 1
      %p133 = por %p131, %p132
      %p135 = scmp.ne.s32.totalorder %s120, %s134
      %p136 = scmp.eq.s32.totalorder %s26, 0
      %p137 = por %p135, %p136
      %s139 = sadd.s32 %s138, 1
      %p142 = scmp.eq.s32.totalorder %s20, 1
      %p143 = scmp.ne.s32.totalorder %s138, %s140
      %p144 = scmp.eq.s32.totalorder %s20, 0
      %p145 = por %p143, %p144
      %p146 = scmp.ne.s32.totalorder %s138, %s140
      %p147 = scmp.eq.s32.totalorder %s25, 1
      %p148 = por %p146, %p147
      %p149 = scmp.ne.s32.totalorder %s140, %s141
      %p150 = scmp.eq.s32.totalorder %s25, 0
      %p151 = por %p149, %p150
      %p152 = scmp.ne.s32.totalorder %s140, %s141
      %p153 = scmp.eq.s32.totalorder %s26, 1
      %p154 = por %p152, %p153
      %p156 = scmp.ne.s32.totalorder %s141, %s155
      %p157 = scmp.eq.s32.totalorder %s26, 0
      %p158 = por %p156, %p157
      %s160 = sadd.s32 %s159, 1
      %p163 = scmp.eq.s32.totalorder %s20, 1
      %p164 = scmp.ne.s32.totalorder %s159, %s161
      %p165 = scmp.eq.s32.totalorder %s20, 0
      %p166 = por %p164, %p165
      %p167 = scmp.ne.s32.totalorder %s159, %s161
      %p168 = scmp.eq.s32.totalorder %s25, 1
      %p169 = por %p167, %p168
      %p170 = scmp.ne.s32.totalorder %s161, %s162
      %p171 = scmp.eq.s32.totalorder %s25, 0
      %p172 = por %p170, %p171
      %p173 = scmp.ne.s32.totalorder %s161, %s162
      %p174 = scmp.eq.s32.totalorder %s26, 1
      %p175 = por %p173, %p174
      %p177 = scmp.ne.s32.totalorder %s162, %s176
      %p178 = scmp.eq.s32.totalorder %s26, 0
      %p179 = por %p177, %p178
      %s181 = sadd.s32 %s180, 1
      %p184 = scmp.eq.s32.totalorder %s20, 1
      %p185 = scmp.ne.s32.totalorder %s180, %s182
      %p186 = scmp.eq.s32.totalorder %s20, 0
      %p187 = por %p185, %p186
      %p188 = scmp.ne.s32.totalorder %s180, %s182
      %p189 = scmp.eq.s32.totalorder %s25, 1
      %p190 = por %p188, %p189
      %p191 = scmp.ne.s32.totalorder %s182, %s183
      %p192 = scmp.eq.s32.totalorder %s25, 0
      %p193 = por %p191, %p192
      %p194 = scmp.ne.s32.totalorder %s182, %s183
      %p195 = scmp.eq.s32.totalorder %s26, 1
      %p196 = por %p194, %p195
      %p198 = scmp.ne.s32.totalorder %s183, %s197
      %p199 = scmp.eq.s32.totalorder %s26, 0
      %p200 = por %p198, %p199
      %s202 = sadd.s32 %s201, 1
      %p205 = scmp.eq.s32.totalorder %s20, 1
      %p206 = scmp.ne.s32.totalorder %s201, %s203
      %p207 = scmp.eq.s32.totalorder %s20, 0
      %p208 = por %p206, %p207
      %p209 = scmp.ne.s32.totalorder %s201, %s203
      %p210 = scmp.eq.s32.totalorder %s25, 1
      %p211 = por %p209, %p210
      %p212 = scmp.ne.s32.totalorder %s203, %s204
      %p213 = scmp.eq.s32.totalorder %s25, 0
      %p214 = por %p212, %p213
      %p215 = scmp.ne.s32.totalorder %s203, %s204
      %p216 = scmp.eq.s32.totalorder %s26, 1
      %p217 = por %p215, %p216
      %p219 = scmp.ne.s32.totalorder %s204, %s218
      %p220 = scmp.eq.s32.totalorder %s26, 0
      %p221 = por %p219, %p220
      %s223 = sadd.s32 %s222, 1
      %p226 = scmp.eq.s32.totalorder %s20, 1
      %p227 = scmp.ne.s32.totalorder %s222, %s224
      %p228 = scmp.eq.s32.totalorder %s20, 0
      %p229 = por %p227, %p228
      %p230 = scmp.ne.s32.totalorder %s222, %s224
      %p231 = scmp.eq.s32.totalorder %s25, 1
      %p232 = por %p230, %p231
      %p233 = scmp.ne.s32.totalorder %s224, %s225
      %p234 = scmp.eq.s32.totalorder %s25, 0
      %p235 = por %p233, %p234
      %p236 = scmp.ne.s32.totalorder %s224, %s225
      %p237 = scmp.eq.s32.totalorder %s26, 1
      %p238 = por %p236, %p237
      %p240 = scmp.ne.s32.totalorder %s225, %s239
      %p241 = scmp.eq.s32.totalorder %s26, 0
      %p242 = por %p240, %p241
      %s243 = ssub.s32 %s27, %s39
      %s244 = ssub.s32 %s28, %s35
      %s245 = sor.u32 %s243, %s244
      %p246 = scmp.eq.s32.totalorder %s245, 0
      %s248 = sadd.s32 %s247, 1
      %s249 = scalar_select %p246, %s247, %s248
      %p252 = pneg %p246
      %p253 = scmp.eq.s32.totalorder %s20, 1
      %p254 = por %p252, %p253
      %p255 = scmp.ne.s32.totalorder %s247, %s250
      %p256 = scmp.eq.s32.totalorder %s20, 0
      %p257 = por %p255, %p256
      %p258 = scmp.ne.s32.totalorder %s247, %s250
      %p259 = scmp.eq.s32.totalorder %s25, 1
      %p260 = por %p258, %p259
      %p261 = scmp.ne.s32.totalorder %s250, %s251
      %p262 = scmp.eq.s32.totalorder %s25, 0
      %p263 = por %p261, %p262
      %p264 = scmp.ne.s32.totalorder %s250, %s251
      %p265 = scmp.eq.s32.totalorder %s26, 1
      %p266 = por %p264, %p265
      %p268 = scmp.ne.s32.totalorder %s251, %s267
      %p269 = scmp.eq.s32.totalorder %s26, 0
      %p270 = por %p268, %p269
      %p271 = scmp.le.s32.totalorder 1, %s20
      %p272 = scmp.lt.s32.totalorder %s20, 3
      %p273 = pnand %p271, %p272
      %p274 = pneg %p273
      // Predicated region
      $region9: #{guide_flow_forward.3} parent=5 // pred_check
        _
      $region10: #{guide_flow_forward.3} parent=5 // pred_check_branch
        %276 = sbr.rel (%p273) target = $region12
      $region11: #{guide_flow_forward.3} parent=5 // pred_region
        %s277 = ssub.s32 %s20, 1
        // Predicated region
        $region13: #{guide_flow_forward.3} parent=11 // pred_check
          %p278 = pneg %p109
        $region14: #{guide_flow_forward.3} parent=11 // pred_check_branch
          %280 = sbr.rel (%p278) target = $region16
        $region15: #{guide_flow_forward.3} parent=11 // pred_region
          %s282 = ssub.s32 128, 128
          %283 = vsyncadd [#allocation4], %s282
          %s285 = sshll.u32 %s2, 4
          %s286 = int_to_ptr.vmem [resolvable:$true] %s285
          %288 = dma.vmem_to_smem %s286, 128, [#allocation3], [#allocation4]
        $region16: #{guide_flow_forward.3} parent=11 // pred_fallthru
          _
        // Predicated region
        $region17: #{guide_flow_forward.3} parent=11 // pred_check
          %p289 = pneg %p130
        $region18: #{guide_flow_forward.3} parent=11 // pred_check_branch
          %291 = sbr.rel (%p289) target = $region20
        $region19: #{guide_flow_forward.3} parent=11 // pred_region
          %s293 = ssub.s32 16, 16
          %294 = vsyncadd [#allocation6], %s293
          %s296 = sshll.u32 %s3, 4
          %s297 = int_to_ptr.vmem [resolvable:$true] %s296
          %299 = dma.vmem_to_smem %s297, 16, [#allocation5], [#allocation6]
        $region20: #{guide_flow_forward.3} parent=11 // pred_fallthru
          _
        // Predicated region
        $region21: #{guide_flow_forward.3} parent=11 // pred_check
          %p300 = pneg %p151
        $region22: #{guide_flow_forward.3} parent=11 // pred_check_branch
          %302 = sbr.rel (%p300) target = $region24
        $region23: #{guide_flow_forward.3} parent=11 // pred_region
          %s304 = ssub.s32 16, 16
          %305 = vsyncadd [#allocation6], %s304
          %s307 = sshll.u32 %s4, 4
          %s308 = int_to_ptr.vmem [resolvable:$true] %s307
          %310 = dma.vmem_to_smem %s308, 16, [#allocation7], [#allocation6]
        $region24: #{guide_flow_forward.3} parent=11 // pred_fallthru
          _
        // Predicated region
        $region25: #{guide_flow_forward.3} parent=11 // pred_check
          %p311 = pneg %p172
        $region26: #{guide_flow_forward.3} parent=11 // pred_check_branch
          %313 = sbr.rel (%p311) target = $region28
        $region27: #{guide_flow_forward.3} parent=11 // pred_region
          %s315 = ssub.s32 16, 16
          %316 = vsyncadd [#allocation9], %s315
          %s318 = sshll.u32 %s5, 4
          %s319 = int_to_ptr.vmem [resolvable:$true] %s318
          %321 = dma.vmem_to_smem %s319, 16, [#allocation8], [#allocation9]
        $region28: #{guide_flow_forward.3} parent=11 // pred_fallthru
          _
        // Predicated region
        $region29: #{guide_flow_forward.3} parent=11 // pred_check
          %p322 = pneg %p193
        $region30: #{guide_flow_forward.3} parent=11 // pred_check_branch
          %324 = sbr.rel (%p322) target = $region32
        $region31: #{guide_flow_forward.3} parent=11 // pred_region
          _
        $region32: #{guide_flow_forward.3} parent=11 // pred_fallthru
          _
        // Predicated region
        $region33: #{guide_flow_forward.3} parent=11 // pred_check
          %p325 = pneg %p214
        $region34: #{guide_flow_forward.3} parent=11 // pred_check_branch
          %327 = sbr.rel (%p325) target = $region36
        $region35: #{guide_flow_forward.3} parent=11 // pred_region
          %s329 = ssub.s32 64, 64
          %330 = vsyncadd [#allocation9], %s329
          %s332 = sshll.u32 %s7, 4
          %s333 = int_to_ptr.vmem [resolvable:$true] %s332
          %335 = dma.vmem_to_smem %s333, 64, [#allocation10], [#allocation9]
        $region36: #{guide_flow_forward.3} parent=11 // pred_fallthru
          _
        // Predicated region
        $region37: #{guide_flow_forward.3} parent=11 // pred_check
          %p336 = pneg %p235
        $region38: #{guide_flow_forward.3} parent=11 // pred_check_branch
          %338 = sbr.rel (%p336) target = $region40
        $region39: #{guide_flow_forward.3} parent=11 // pred_region
          %s340 = ssub.s32 16, 16
          %341 = vsyncadd [#allocation12], %s340
          %s343 = sshll.u32 %s8, 4
          %s344 = int_to_ptr.vmem [resolvable:$true] %s343
          %346 = dma.vmem_to_smem %s344, 16, [#allocation11], [#allocation12]
        $region40: #{guide_flow_forward.3} parent=11 // pred_fallthru
          _
      $region12: #{guide_flow_forward.3} parent=5 // pred_fallthru
        _
      %p347 = scmp.lt.s32.totalorder %s20, 2
      // Predicated region
      $region41: #{guide_flow_forward.3} parent=5 // pred_check
        %p348 = pneg %p347
      $region42: #{guide_flow_forward.3} parent=5 // pred_check_branch
        %350 = sbr.rel (%p348) target = $region44
      $region43: #{guide_flow_forward.3} parent=5 // pred_region
        // Predicated region
        $region45: #{guide_flow_forward.3} parent=43 // pred_check
          %p351 = pneg %p54
        $region46: #{guide_flow_forward.3} parent=43 // pred_check_branch
          %353 = sbr.rel (%p351) target = $region48
        $region47: #{guide_flow_forward.3} parent=43 // pred_region
          %p354 = scmp.lt.s32.totalorder %s27, 1
          %s355 = scalar_select %p354, %s27, 1
          %p356 = scmp.lt.s32.totalorder %s28, 0
          %s357 = scalar_select %p356, %s28, 0
          %s358 = smul.addr %s355, 4
          %s359 = sadd.s32 %s357, %s358
          %s360 = smul.addr %s359, 2
          %s361 = scalar_lea.vmem %s0, %s360
        $region48: #{guide_flow_forward.3} parent=43 // pred_fallthru
          _
        // Predicated region
        $region49: #{guide_flow_forward.3} parent=43 // pred_check
          %p362 = pneg %p82
        $region50: #{guide_flow_forward.3} parent=43 // pred_check_branch
          %364 = sbr.rel (%p362) target = $region52
        $region51: #{guide_flow_forward.3} parent=43 // pred_region
          %p365 = scmp.lt.s32.totalorder %s27, 1
          %s366 = scalar_select %p365, %s27, 1
          %p367 = scmp.lt.s32.totalorder %s28, 0
          %s368 = scalar_select %p367, %s28, 0
          %s369 = sadd.s32 %s368, %s366
          %s370 = smul.addr %s369, 2
          %s371 = scalar_lea.vmem %s1, %s370
        $region52: #{guide_flow_forward.3} parent=43 // pred_fallthru
          _
      $region44: #{guide_flow_forward.3} parent=5 // pred_fallthru
        _
      %p372 = scmp.le.s32.totalorder 1, %s20
      %p373 = scmp.lt.s32.totalorder %s20, 3
      %p374 = pnand %p372, %p373
      %p375 = pneg %p374
      // Predicated region
      $region53: #{guide_flow_forward.3} parent=5 // pred_check
        _
      $region54: #{guide_flow_forward.3} parent=5 // pred_check_branch
        %377 = sbr.rel (%p374) target = $region56
      $region55: #{guide_flow_forward.3} parent=5 // pred_region
        %s378 = ssub.s32 %s20, 1
        // Predicated region
        $region57: #{guide_flow_forward.3} parent=55 // pred_check
          %p379 = pneg %p109
        $region58: #{guide_flow_forward.3} parent=55 // pred_check_branch
          %381 = sbr.rel (%p379) target = $region60
        $region59: #{guide_flow_forward.3} parent=55 // pred_region
          %382 = dma.done [#allocation4], 128
        $region60: #{guide_flow_forward.3} parent=55 // pred_fallthru
          _
        // Predicated region
        $region61: #{guide_flow_forward.3} parent=55 // pred_check
          %p383 = pneg %p130
        $region62: #{guide_flow_forward.3} parent=55 // pred_check_branch
          %385 = sbr.rel (%p383) target = $region64
        $region63: #{guide_flow_forward.3} parent=55 // pred_region
          %386 = dma.done [#allocation6], 16
        $region64: #{guide_flow_forward.3} parent=55 // pred_fallthru
          _
        // Predicated region
        $region65: #{guide_flow_forward.3} parent=55 // pred_check
          %p387 = pneg %p151
        $region66: #{guide_flow_forward.3} parent=55 // pred_check_branch
          %389 = sbr.rel (%p387) target = $region68
        $region67: #{guide_flow_forward.3} parent=55 // pred_region
          %390 = dma.done [#allocation6], 16
        $region68: #{guide_flow_forward.3} parent=55 // pred_fallthru
          _
        // Predicated region
        $region69: #{guide_flow_forward.3} parent=55 // pred_check
          %p391 = pneg %p172
        $region70: #{guide_flow_forward.3} parent=55 // pred_check_branch
          %393 = sbr.rel (%p391) target = $region72
        $region71: #{guide_flow_forward.3} parent=55 // pred_region
          %394 = dma.done [#allocation9], 16
        $region72: #{guide_flow_forward.3} parent=55 // pred_fallthru
          _
        // Predicated region
        $region73: #{guide_flow_forward.3} parent=55 // pred_check
          %p395 = pneg %p214
        $region74: #{guide_flow_forward.3} parent=55 // pred_check_branch
          %397 = sbr.rel (%p395) target = $region76
        $region75: #{guide_flow_forward.3} parent=55 // pred_region
          %398 = dma.done [#allocation9], 64
        $region76: #{guide_flow_forward.3} parent=55 // pred_fallthru
          _
        // Predicated region
        $region77: #{guide_flow_forward.3} parent=55 // pred_check
          %p399 = pneg %p235
        $region78: #{guide_flow_forward.3} parent=55 // pred_check_branch
          %401 = sbr.rel (%p399) target = $region80
        $region79: #{guide_flow_forward.3} parent=55 // pred_region
          %402 = dma.done [#allocation12], 16
        $region80: #{guide_flow_forward.3} parent=55 // pred_fallthru
          _
        %403 = sfence
        %p404 = scmp.lt.s32.totalorder %s29, 1
        %s405 = scalar_select %p404, %s29, 1
        %p406 = scmp.lt.s32.totalorder %s30, 0
        %s407 = scalar_select %p406, %s30, 0
        %s408 = smul.addr %s405, 4
        %s409 = sadd.s32 %s407, %s408
        %s410 = smul.addr %s409, 2
        %s411 = scalar_lea.vmem %s0, %s410
        %p412 = pneg %p60
        %p413 = pneg %p57
        %p414 = scmp.lt.s32.totalorder %s29, 1
        %s415 = scalar_select %p414, %s29, 1
        %p416 = scmp.lt.s32.totalorder %s30, 0
        %s417 = scalar_select %p416, %s30, 0
        %s418 = sadd.s32 %s417, %s415
        %s419 = smul.addr %s418, 2
        %s420 = scalar_lea.vmem %s1, %s419
        %p421 = pneg %p88
        %p422 = pneg %p85
        %p423 = pneg %p109
        %p424 = pneg %p106
        %p425 = pneg %p130
        %p426 = pneg %p127
        %p427 = pneg %p151
        %p428 = pneg %p148
        %p429 = pneg %p172
        %p430 = pneg %p169
        %p431 = pneg %p193
        %p432 = pneg %p190
        %p433 = pneg %p214
        %p434 = pneg %p211
        %p435 = pneg %p235
        %p436 = pneg %p232
        %p437 = pneg %p263
        %p438 = pneg %p260
        %p439 = scmp.lt.s32.totalorder %s29, 1
        %s440 = scalar_select %p439, %s29, 1
        %p441 = scmp.lt.s32.totalorder %s30, 0
        %s442 = scalar_select %p441, %s30, 0
        %s443 = smul.addr %s440, 4
        %s444 = sadd.s32 %s442, %s443
        %s445 = smul.addr %s444, 2
        %s446 = scalar_lea.vmem %s9, %s445
        %p447 = scmp.lt.s32.totalorder %s29, 1
        %s448 = scalar_select %p447, %s29, 1
        %p449 = scmp.lt.s32.totalorder %s30, 0
        %s450 = scalar_select %p449, %s30, 0
        %s451 = smul.addr %s448, 4
        %s452 = sadd.s32 %s450, %s451
        %s453 = smul.addr %s452, 2
        %s454 = scalar_lea.vmem %s0, %s453
        %p455 = scmp.lt.s32.totalorder %s29, 1
        %s456 = scalar_select %p455, %s29, 1
        %p457 = scmp.lt.s32.totalorder %s30, 0
        %s458 = scalar_select %p457, %s30, 0
        %s459 = sadd.s32 %s458, %s456
        %s460 = smul.addr %s459, 2
        %s461 = scalar_lea.vmem %s1, %s460
        %p462 = scmp.lt.s32.totalorder %s29, 1
        %s463 = scalar_select %p462, %s29, 1
        %p464 = scmp.lt.s32.totalorder %s30, 0
        %s465 = scalar_select %p464, %s30, 0
        %s466 = smul.addr %s463, 4
        %s467 = sadd.s32 %s465, %s466
        %s468 = smul.addr %s467, 2
        %s469 = scalar_lea.vmem %s9, %s468
        %v470 = vld [vmem:[%s461] sm:$0x3]
        %v471 = vld [vmem:[%s454] sm:$0x3]
        %s472 = scalar_lea.vmem %s454, 2
        %v473 = vld [vmem:[%s472] sm:$0x3]
        %s474 = scalar_lea.vmem %s454, 4
        %v475 = vld [vmem:[%s474] sm:$0x3]
        %s476 = scalar_lea.vmem %s454, 6
        %v477 = vld [vmem:[%s476] sm:$0x3]
        %s478 = sld [smem:[#allocation5]]
        %v479 = vstv %s478
        %v480 = vmul.f32 %v479, %v470
        %s481 = sld [smem:[#allocation7]]
        %v482 = vstv %s481
        %v483 = vadd.f32 %v480, %v482
        %s484 = sld [smem:[#allocation3]]
        %v485 = vstv %s484
        %v486 = vmul.f32 %v485, %v471
        %v487 = vadd.f32 %v483, %v486
        %s488 = sld [smem:[#allocation3 + $0x1]]
        %v489 = vstv %s488
        %v490 = vmul.f32 %v489, %v473
        %v491 = vadd.f32 %v487, %v490
        %s492 = sld [smem:[#allocation3 + $0x2]]
        %v493 = vstv %s492
        %v494 = vmul.f32 %v493, %v475
        %v495 = vadd.f32 %v491, %v494
        %s496 = sld [smem:[#allocation3 + $0x3]]
        %v497 = vstv %s496
        %v498 = vmul.f32 %v497, %v477
        %v499 = vadd.f32 %v495, %v498
        %v500 = vmax.f32 %v499, 0.0
        %s501 = sld [smem:[#allocation5 + $0x1]]
        %v502 = vstv %s501
        %v503 = vmul.f32 %v502, %v470
        %s504 = sld [smem:[#allocation7 + $0x1]]
        %v505 = vstv %s504
        %v506 = vadd.f32 %v503, %v505
        %s507 = sld [smem:[#allocation3 + $0x80]]
        %v508 = vstv %s507
        %v509 = vmul.f32 %v508, %v471
        %v510 = vadd.f32 %v506, %v509
        %s511 = sld [smem:[#allocation3 + $0x81]]
        %v512 = vstv %s511
        %v513 = vmul.f32 %v512, %v473
        %v514 = vadd.f32 %v510, %v513
        %s515 = sld [smem:[#allocation3 + $0x82]]
        %v516 = vstv %s515
        %v517 = vmul.f32 %v516, %v475
        %v518 = vadd.f32 %v514, %v517
        %s519 = sld [smem:[#allocation3 + $0x83]]
        %v520 = vstv %s519
        %v521 = vmul.f32 %v520, %v477
        %v522 = vadd.f32 %v518, %v521
        %v523 = vmax.f32 %v522, 0.0
        %s524 = sld [smem:[#allocation5 + $0x2]]
        %v525 = vstv %s524
        %v526 = vmul.f32 %v525, %v470
        %s527 = sld [smem:[#allocation7 + $0x2]]
        %v528 = vstv %s527
        %v529 = vadd.f32 %v526, %v528
        %s530 = sld [smem:[#allocation3 + $0x100]]
        %v531 = vstv %s530
        %v532 = vmul.f32 %v531, %v471
        %v533 = vadd.f32 %v529, %v532
        %s534 = sld [smem:[#allocation3 + $0x101]]
        %v535 = vstv %s534
        %v536 = vmul.f32 %v535, %v473
        %v537 = vadd.f32 %v533, %v536
        %s538 = sld [smem:[#allocation3 + $0x102]]
        %v539 = vstv %s538
        %v540 = vmul.f32 %v539, %v475
        %v541 = vadd.f32 %v537, %v540
        %s542 = sld [smem:[#allocation3 + $0x103]]
        %v543 = vstv %s542
        %v544 = vmul.f32 %v543, %v477
        %v545 = vadd.f32 %v541, %v544
        %v546 = vmax.f32 %v545, 0.0
        %s547 = sld [smem:[#allocation5 + $0x3]]
        %v548 = vstv %s547
        %v549 = vmul.f32 %v548, %v470
        %s550 = sld [smem:[#allocation7 + $0x3]]
        %v551 = vstv %s550
        %v552 = vadd.f32 %v549, %v551
        %s553 = sld [smem:[#allocation3 + $0x180]]
        %v554 = vstv %s553
        %v555 = vmul.f32 %v554, %v471
        %v556 = vadd.f32 %v552, %v555
        %s557 = sld [smem:[#allocation3 + $0x181]]
        %v558 = vstv %s557
        %v559 = vmul.f32 %v558, %v473
        %v560 = vadd.f32 %v556, %v559
        %s561 = sld [smem:[#allocation3 + $0x182]]
        %v562 = vstv %s561
        %v563 = vmul.f32 %v562, %v475
        %v564 = vadd.f32 %v560, %v563
        %s565 = sld [smem:[#allocation3 + $0x183]]
        %v566 = vstv %s565
        %v567 = vmul.f32 %v566, %v477
        %v568 = vadd.f32 %v564, %v567
        %v569 = vmax.f32 %v568, 0.0
        %s570 = sld [smem:[#allocation5 + $0x4]]
        %v571 = vstv %s570
        %v572 = vmul.f32 %v571, %v470
        %s573 = sld [smem:[#allocation7 + $0x4]]
        %v574 = vstv %s573
        %v575 = vadd.f32 %v572, %v574
        %s576 = sld [smem:[#allocation3 + $0x200]]
        %v577 = vstv %s576
        %v578 = vmul.f32 %v577, %v471
        %v579 = vadd.f32 %v575, %v578
        %s580 = sld [smem:[#allocation3 + $0x201]]
        %v581 = vstv %s580
        %v582 = vmul.f32 %v581, %v473
        %v583 = vadd.f32 %v579, %v582
        %s584 = sld [smem:[#allocation3 + $0x202]]
        %v585 = vstv %s584
        %v586 = vmul.f32 %v585, %v475
        %v587 = vadd.f32 %v583, %v586
        %s588 = sld [smem:[#allocation3 + $0x203]]
        %v589 = vstv %s588
        %v590 = vmul.f32 %v589, %v477
        %v591 = vadd.f32 %v587, %v590
        %v592 = vmax.f32 %v591, 0.0
        %s593 = sld [smem:[#allocation8]]
        %v594 = vstv %s593
        %v595 = vmul.f32 %v594, %v500
        %s596 = sld [smem:[#allocation2]]
        %v597 = vstv %s596
        %v598 = vadd.f32 %v595, %v597
        %s599 = sld [smem:[#allocation8 + $0x1]]
        %v600 = vstv %s599
        %v601 = vmul.f32 %v600, %v523
        %v602 = vadd.f32 %v598, %v601
        %s603 = sld [smem:[#allocation8 + $0x2]]
        %v604 = vstv %s603
        %v605 = vmul.f32 %v604, %v546
        %v606 = vadd.f32 %v602, %v605
        %s607 = sld [smem:[#allocation8 + $0x3]]
        %v608 = vstv %s607
        %v609 = vmul.f32 %v608, %v569
        %v610 = vadd.f32 %v606, %v609
        %s611 = sld [smem:[#allocation8 + $0x4]]
        %v612 = vstv %s611
        %v613 = vmul.f32 %v612, %v592
        %v614 = vadd.f32 %v610, %v613
        %v615 = vxor.u32 %v614, 2147483648
        %v616 = vmul.f32 %v615, 1.442695
        %v617 = vpow.pop %v616
        %v618 = vadd.f32 %v617, 1.0
        %v619 = vrcp.pop %v618
        %v620 = vmul.f32 1.0, %v619
        %v621 = vadd.f32 %v620, 1.0
        %v622 = vmul.f32 %v471, %v621
        %v623 = vmul.f32 %v473, %v621
        %v624 = vmul.f32 %v475, %v621
        %v625 = vmul.f32 %v477, %v621
        %s626 = sld [smem:[#allocation10]]
        %v627 = vstv %s626
        %v628 = vmul.f32 %v627, %v622
        %s629 = sld [smem:[#allocation11]]
        %v630 = vstv %s629
        %v631 = vadd.f32 %v628, %v630
        %s632 = sld [smem:[#allocation10 + $0x1]]
        %v633 = vstv %s632
        %v634 = vmul.f32 %v633, %v623
        %v635 = vadd.f32 %v631, %v634
        %s636 = sld [smem:[#allocation10 + $0x2]]
        %v637 = vstv %s636
        %v638 = vmul.f32 %v637, %v624
        %v639 = vadd.f32 %v635, %v638
        %s640 = sld [smem:[#allocation10 + $0x3]]
        %v641 = vstv %s640
        %v642 = vmul.f32 %v641, %v625
        %v643 = vadd.f32 %v639, %v642
        %644 = vst [vmem:[%s469] sm:$0x3] %v643
        %s645 = sld [smem:[#allocation10 + $0x80]]
        %v646 = vstv %s645
        %v647 = vmul.f32 %v646, %v622
        %s648 = sld [smem:[#allocation11 + $0x1]]
        %v649 = vstv %s648
        %v650 = vadd.f32 %v647, %v649
        %s651 = sld [smem:[#allocation10 + $0x81]]
        %v652 = vstv %s651
        %v653 = vmul.f32 %v652, %v623
        %v654 = vadd.f32 %v650, %v653
        %s655 = sld [smem:[#allocation10 + $0x82]]
        %v656 = vstv %s655
        %v657 = vmul.f32 %v656, %v624
        %v658 = vadd.f32 %v654, %v657
        %s659 = sld [smem:[#allocation10 + $0x83]]
        %v660 = vstv %s659
        %v661 = vmul.f32 %v660, %v625
        %v662 = vadd.f32 %v658, %v661
        %s663 = scalar_lea.vmem %s469, 2
        %664 = vst [vmem:[%s663] sm:$0x3] %v662
        %s665 = sld [smem:[#allocation10 + $0x100]]
        %v666 = vstv %s665
        %v667 = vmul.f32 %v666, %v622
        %s668 = sld [smem:[#allocation11 + $0x2]]
        %v669 = vstv %s668
        %v670 = vadd.f32 %v667, %v669
        %s671 = sld [smem:[#allocation10 + $0x101]]
        %v672 = vstv %s671
        %v673 = vmul.f32 %v672, %v623
        %v674 = vadd.f32 %v670, %v673
        %s675 = sld [smem:[#allocation10 + $0x102]]
        %v676 = vstv %s675
        %v677 = vmul.f32 %v676, %v624
        %v678 = vadd.f32 %v674, %v677
        %s679 = sld [smem:[#allocation10 + $0x103]]
        %v680 = vstv %s679
        %v681 = vmul.f32 %v680, %v625
        %v682 = vadd.f32 %v678, %v681
        %s683 = scalar_lea.vmem %s469, 4
        %684 = vst [vmem:[%s683] sm:$0x3] %v682
        %s685 = sld [smem:[#allocation10 + $0x180]]
        %v686 = vstv %s685
        %v687 = vmul.f32 %v686, %v622
        %s688 = sld [smem:[#allocation11 + $0x3]]
        %v689 = vstv %s688
        %v690 = vadd.f32 %v687, %v689
        %s691 = sld [smem:[#allocation10 + $0x181]]
        %v692 = vstv %s691
        %v693 = vmul.f32 %v692, %v623
        %v694 = vadd.f32 %v690, %v693
        %s695 = sld [smem:[#allocation10 + $0x182]]
        %v696 = vstv %s695
        %v697 = vmul.f32 %v696, %v624
        %v698 = vadd.f32 %v694, %v697
        %s699 = sld [smem:[#allocation10 + $0x183]]
        %v700 = vstv %s699
        %v701 = vmul.f32 %v700, %v625
        %v702 = vadd.f32 %v698, %v701
        %s703 = scalar_lea.vmem %s469, 6
        %704 = vst [vmem:[%s703] sm:$0x3] %v702
        %p705 = scmp.lt.s32.totalorder %s29, 1
        %s706 = scalar_select %p705, %s29, 1
        %p707 = scmp.lt.s32.totalorder %s30, 0
        %s708 = scalar_select %p707, %s30, 0
        %s709 = smul.addr %s706, 4
        %s710 = sadd.s32 %s708, %s709
        %s711 = smul.addr %s710, 2
        %s712 = scalar_lea.vmem %s9, %s711
        // Predicated region
        $region81: #{guide_flow_forward.3} parent=55 // pred_check
          %p713 = pneg %p260
        $region82: #{guide_flow_forward.3} parent=55 // pred_check_branch
          %715 = sbr.rel (%p713) target = $region84
        $region83: #{guide_flow_forward.3} parent=55 // pred_region
          _
        $region84: #{guide_flow_forward.3} parent=55 // pred_fallthru
          _
      $region56: #{guide_flow_forward.3} parent=5 // pred_fallthru
        _
      %p716 = scmp.le.s32.totalorder 2, %s20
      // Predicated region
      $region85: #{guide_flow_forward.3} parent=5 // pred_check
        %p717 = pneg %p716
      $region86: #{guide_flow_forward.3} parent=5 // pred_check_branch
        %719 = sbr.rel (%p717) target = $region88
      $region87: #{guide_flow_forward.3} parent=5 // pred_region
        %s720 = ssub.s32 %s20, 2
        // Predicated region
        $region89: #{guide_flow_forward.3} parent=87 // pred_check
          %p721 = pneg %p266
        $region90: #{guide_flow_forward.3} parent=87 // pred_check_branch
          %723 = sbr.rel (%p721) target = $region92
        $region91: #{guide_flow_forward.3} parent=87 // pred_region
          %p724 = scmp.lt.s32.totalorder %s31, 1
          %s725 = scalar_select %p724, %s31, 1
          %p726 = scmp.lt.s32.totalorder %s32, 0
          %s727 = scalar_select %p726, %s32, 0
          %s728 = smul.addr %s725, 4
          %s729 = sadd.s32 %s727, %s728
          %s730 = smul.addr %s729, 2
          %s731 = scalar_lea.vmem %s9, %s730
        $region92: #{guide_flow_forward.3} parent=87 // pred_fallthru
          _
      $region88: #{guide_flow_forward.3} parent=5 // pred_fallthru
        _
    $region6: #{guide_flow_forward.3} parent=1 // loop_footer
      %s24 = sadd.s32 1, %s20
    $region7: #{guide_flow_forward.3} parent=1 // loop_footer_branch
      %19 = sbr.rel target = $region3
    $region8: #{guide_flow_forward.3} parent=1 // loop_exit
      _
    %732 = vsyncpa [#allocation4], 1
    %s733 = scalar_lea.sflag [#allocation4], 1
    %734 = vsyncpa %s733, 1
    %735 = vsyncpa [#allocation6], 1
    %736 = vsyncpa [#allocation9], 1
    %737 = vsyncpa [#allocation12], 1

</llo_original>
